<compile_context>
chip_gen: v7x
topology: tpu7x:2x2x1
jax: 0.10.0
libtpu: 0.0.40
codegen_flags: <defaults>
</compile_context>

<pallas_src>
import functools

import jax
import jax.numpy as jnp
from jax.experimental import pallas as pl
from jax.experimental.pallas import tpu as pltpu


def protonet_fused_kernel(lhs_ref, wband_ref, b_ref, wt_ref, o_ref, *,
                          n_total, n_support, d_emb):
    # lhs_ref:   (N*H, 3*Wp*Cin) bf16  im2row of padded input (1 row / image row)
    # wband_ref: (3*Wp*Cin, W*Cout) bf16  banded conv weight
    # b_ref:     (1, W*Cout) f32          bias tiled across W
    # wt_ref:    (K, N) f32               class-mean weights (zero query cols)
    # o_ref:     (Q, K) f32               log-softmax scores

    # ---- embedding net: 3x3 same conv + bias + ReLU as one MXU matmul ------
    conv = jnp.dot(lhs_ref[...], wband_ref[...],
                   preferred_element_type=jnp.float32)         # (N*H, W*Cout)
    conv = jnp.maximum(conv + b_ref[...], 0.0)

    # Per-sample flatten: (N*H, W*Cout) -> (N, D), D = H*W*Cout (lane-dense).
    emb = conv.reshape(n_total, d_emb)

    # ---- prototypes: class means over support = one small matmul -----------
    protos = jnp.dot(wt_ref[...], emb,
                     preferred_element_type=jnp.float32)       # (K, D)

    # ---- -squared-distance via Gram matrix ----------------------------------
    # dist[q,k] = ||q||^2 + ||p_k||^2 - 2 q.p_k ; the ||q||^2 term is constant
    # per row so it cancels in log_softmax and is omitted.
    g = jnp.einsum('nd,kd->nk', emb, protos,
                   preferred_element_type=jnp.float32)         # (N, K)
    pg = jnp.einsum('kd,jd->kj', protos, protos,
                    preferred_element_type=jnp.float32)        # (K, K)
    kk = pg.shape[0]
    eye = (jax.lax.broadcasted_iota(jnp.int32, (kk, kk), 0)
           == jax.lax.broadcasted_iota(jnp.int32, (kk, kk), 1)
           ).astype(jnp.float32)
    pn = jnp.sum(pg * eye, axis=0, keepdims=True)              # (1, K) = ||p_k||^2

    logits = 2.0 * g[n_support:] - pn                          # (Q, K)

    # ---- log_softmax over classes -------------------------------------------
    m = jnp.max(logits, axis=1, keepdims=True)
    lse = m + jnp.log(jnp.sum(jnp.exp(logits - m), axis=1, keepdims=True))
    o_ref[...] = logits - lse


def protonet_forward(support_data, query_data, support_label,
                     conv_w, conv_b, num_classes):
    """ProtoNet forward: embed -> class-mean prototypes -> -dist -> log_softmax.

    support_data/query_data are NCHW (PyTorch convention); conv_w is HWIO
    (3, 3, Cin, Cout), conv_b is (Cout,).
    """
    S, Q = support_data.shape[0], query_data.shape[0]
    N = S + Q
    x = jnp.concatenate([support_data, query_data], axis=0)
    x = jnp.transpose(x, (0, 2, 3, 1)).astype(jnp.float32)       # NCHW -> NHWC
    _, H, W, Cin = x.shape
    Hp, Wp = H + 2, W + 2
    Cout = conv_w.shape[-1]
    D = H * W * Cout

    # im2row: one LHS row per output image row = the 3 padded rows it reads.
    xp = jnp.pad(x, ((0, 0), (1, 1), (1, 1), (0, 0)))
    lhs = jnp.stack([xp[:, r:r + H] for r in range(3)], axis=2)   # (N,H,3,Wp,Cin)
    lhs = lhs.reshape(N * H, 3 * Wp * Cin).astype(jnp.bfloat16)

    # Banded conv weight: row (kh*Wp + wc)*Cin + ci, col wo*Cout + co holds
    # w[kh, wc - wo, ci, co] (zero outside the 3-tap band).
    sel = (jnp.arange(Wp)[None, :, None]
           == jnp.arange(W)[:, None, None] + jnp.arange(3)[None, None, :]
           ).astype(jnp.float32)                                  # (W, Wp, 3)
    wband = jnp.einsum('abk,hkij->hbiaj', sel, conv_w.astype(jnp.float32))
    wband = wband.reshape(3 * Wp * Cin, W * Cout).astype(jnp.bfloat16)
    btile = jnp.tile(conv_b.astype(jnp.float32), W).reshape(1, W * Cout)

    # Class-mean weights over the support set (zero columns for query samples).
    # TODO(synk): torch uses support_label.unique() (data-dependent shape); we
    # assume labels are exactly 0..num_classes-1 and every class is present.
    classes = jnp.arange(num_classes, dtype=support_label.dtype)
    onehot = (support_label[None, :] == classes[:, None]).astype(jnp.float32)
    wt = onehot / jnp.sum(onehot, axis=1, keepdims=True)          # (K, S)
    wt_full = jnp.concatenate(
        [wt, jnp.zeros((num_classes, Q), jnp.float32)], axis=1)   # (K, N)

    kernel = functools.partial(protonet_fused_kernel,
                               n_total=N, n_support=S, d_emb=D)
    # TODO(synk): whole episode fits one VMEM-resident grid step (~300 KB of
    # operands), so no megacore split; a v7x 2-TC split would need a cross-core
    # reduction of the support embeddings for marginal gain at this size.
    return pl.pallas_call(
        kernel,
        out_shape=jax.ShapeDtypeStruct((Q, num_classes), jnp.float32),
        grid=(1,),
        in_specs=[
            pl.BlockSpec((N * H, 3 * Wp * Cin), lambda i: (0, 0)),
            pl.BlockSpec((3 * Wp * Cin, W * Cout), lambda i: (0, 0)),
            pl.BlockSpec((1, W * Cout), lambda i: (0, 0)),
            pl.BlockSpec((num_classes, N), lambda i: (0, 0)),
        ],
        out_specs=pl.BlockSpec((Q, num_classes), lambda i: (0, 0)),
        compiler_params=pltpu.CompilerParams(
            dimension_semantics=("arbitrary",)),
    )(lhs, wband, btile, wt_full)


if __name__ == "__main__":
    key = jax.random.PRNGKey(0)
    k_w, k_b, k_s, k_q, k_p = jax.random.split(key, 5)

    # 3-way, 2-shot episode; 6 queries; 4-channel 16x16 inputs; 8-channel
    # embedding -> D = 16*16*8 = 2048.
    Cin, Cemb, H, W = 4, 8, 16, 16
    num_classes, shots, n_query = 3, 2, 6
    S = num_classes * shots

    conv_w = 0.1 * jax.random.normal(k_w, (3, 3, Cin, Cemb), jnp.float32)
    conv_b = 0.1 * jax.random.normal(k_b, (Cemb,), jnp.float32)

    support_data = jax.random.normal(k_s, (S, Cin, H, W), jnp.float32)
    query_data = jax.random.normal(k_q, (n_query, Cin, H, W), jnp.float32)
    support_label = jax.random.permutation(
        k_p, jnp.repeat(jnp.arange(num_classes, dtype=jnp.int32), shots))

    scores = protonet_forward(support_data, query_data, support_label,
                              conv_w, conv_b, num_classes)
    scores = jax.block_until_ready(scores)
    assert scores.shape == (n_query, num_classes)

    # Pure-JAX reference (same bf16 conv operands, torch-style broadcast dist).
    def reference(sup, qry, lbl, w, b, k):
        x = jnp.transpose(jnp.concatenate([sup, qry], axis=0), (0, 2, 3, 1))
        xb = x.astype(jnp.bfloat16).astype(jnp.float32)
        wb = w.astype(jnp.bfloat16).astype(jnp.float32)
        xp_ = jnp.pad(xb, ((0, 0), (1, 1), (1, 1), (0, 0)))
        Hh, Ww = x.shape[1], x.shape[2]
        out = jnp.zeros((x.shape[0], Hh, Ww, w.shape[-1]), jnp.float32)
        for kh in range(3):
            for kw in range(3):
                out = out + jnp.einsum('nhwc,cd->nhwd',
                                       xp_[:, kh:kh + Hh, kw:kw + Ww],
                                       wb[kh, kw])
        emb = jnp.maximum(out + b, 0.0).reshape(x.shape[0], -1)
        se, qe = emb[:sup.shape[0]], emb[sup.shape[0]:]
        oh = (lbl[None, :] == jnp.arange(k, dtype=lbl.dtype)[:, None]
              ).astype(jnp.float32)
        protos = (oh / oh.sum(axis=1, keepdims=True)) @ se
        dist = jnp.sum((qe[:, None, :] - protos[None, :, :]) ** 2, axis=2)
        return jax.nn.log_softmax(-dist, axis=1)

    ref_scores = reference(support_data, query_data, support_label,
                           conv_w, conv_b, num_classes)

    # log_softmax rows must sum (in prob space) to 1, and match the reference.
    assert bool(jnp.all(jnp.abs(jnp.sum(jnp.exp(scores), axis=1) - 1.0) < 1e-4))
    assert bool(jnp.allclose(scores, ref_scores, atol=1e-1, rtol=1e-2))
    print("KERNEL_OK")
</pallas_src>

<mosaic_0001>
module attributes {stable_mosaic.version = 11 : i64} {
  func.func @protonet_fused_kernel(%arg0: i32, %arg1: memref<192x216xbf16, #tpu.memory_space<vmem>>, %arg2: memref<216x128xbf16, #tpu.memory_space<vmem>>, %arg3: memref<1x128xf32, #tpu.memory_space<vmem>>, %arg4: memref<3x12xf32, #tpu.memory_space<vmem>>, %arg5: memref<6x3xf32, #tpu.memory_space<vmem>>) attributes {dimension_semantics = [#tpu.dimension_semantics<arbitrary>], iteration_bounds = array<i64: 1>, scalar_prefetch = 0 : i64, scratch_operands = 0 : i64, tpu.core_type = #tpu.core_type<tc>, window_params = [{pipeline_mode = #tpu.pipeline_mode<synchronous>, transform_indices = @transform_0, window_bounds = array<i64: 192, 216>}, {pipeline_mode = #tpu.pipeline_mode<synchronous>, transform_indices = @transform_1, window_bounds = array<i64: 216, 128>}, {pipeline_mode = #tpu.pipeline_mode<synchronous>, transform_indices = @transform_2, window_bounds = array<i64: 1, 128>}, {pipeline_mode = #tpu.pipeline_mode<synchronous>, transform_indices = @transform_3, window_bounds = array<i64: 3, 12>}, {pipeline_mode = #tpu.pipeline_mode<synchronous>, transform_indices = @transform_4, window_bounds = array<i64: 6, 3>}]} {
    %c0 = arith.constant 0 : index
    %c0_0 = arith.constant 0 : index
    %0 = vector.load %arg1[%c0, %c0_0] : memref<192x216xbf16, #tpu.memory_space<vmem>>, vector<192x216xbf16>
    %c0_1 = arith.constant 0 : index
    %c0_2 = arith.constant 0 : index
    %1 = vector.load %arg2[%c0_1, %c0_2] : memref<216x128xbf16, #tpu.memory_space<vmem>>, vector<216x128xbf16>
    %cst = arith.constant dense<0.000000e+00> : vector<192x128xf32>
    %2 = tpu.matmul %0, %1, %cst {dimension_numbers = #tpu.dot_dimension_numbers<[1], [0], [0], [1], [0, 0, 1, 1], [], []>} : vector<192x216xbf16>, vector<216x128xbf16>, vector<192x128xf32> -> vector<192x128xf32>
    %c0_3 = arith.constant 0 : index
    %c0_4 = arith.constant 0 : index
    %3 = vector.load %arg3[%c0_3, %c0_4] : memref<1x128xf32, #tpu.memory_space<vmem>>, vector<1x128xf32>
    %4 = vector.broadcast %3 : vector<1x128xf32> to vector<192x128xf32>
    %5 = arith.addf %2, %4 : vector<192x128xf32>
    %cst_5 = arith.constant 0.000000e+00 : f32
    %6 = vector.broadcast %cst_5 : f32 to vector<192x128xf32>
    %7 = arith.maximumf %5, %6 : vector<192x128xf32>
    %8 = vector.shape_cast %7 : vector<192x128xf32> to vector<12x2048xf32>
    %c0_6 = arith.constant 0 : index
    %c0_7 = arith.constant 0 : index
    %9 = vector.load %arg4[%c0_6, %c0_7] : memref<3x12xf32, #tpu.memory_space<vmem>>, vector<3x12xf32>
    %cst_8 = arith.constant dense<0.000000e+00> : vector<3x2048xf32>
    %10 = tpu.matmul %9, %8, %cst_8 {dimension_numbers = #tpu.dot_dimension_numbers<[1], [0], [0], [1], [0, 0, 1, 1], [], []>} : vector<3x12xf32>, vector<12x2048xf32>, vector<3x2048xf32> -> vector<3x2048xf32>
    "tpu.trace_start"() <{level = 10 : i32, message = "nd,kd->nk"}> : () -> ()
    %cst_9 = arith.constant dense<0.000000e+00> : vector<12x3xf32>
    %11 = tpu.matmul %8, %10, %cst_9 {dimension_numbers = #tpu.dot_dimension_numbers<[1], [1], [0], [0], [0, 0, 1, 0], [], []>} : vector<12x2048xf32>, vector<3x2048xf32>, vector<12x3xf32> -> vector<12x3xf32>
    "tpu.trace_stop"() : () -> ()
    "tpu.trace_start"() <{level = 10 : i32, message = "kd,jd->kj"}> : () -> ()
    %cst_10 = arith.constant dense<0.000000e+00> : vector<3x3xf32>
    %12 = tpu.matmul %10, %10, %cst_10 {dimension_numbers = #tpu.dot_dimension_numbers<[1], [1], [0], [0], [0, 0, 1, 0], [], []>} : vector<3x2048xf32>, vector<3x2048xf32>, vector<3x3xf32> -> vector<3x3xf32>
    "tpu.trace_stop"() : () -> ()
    %13 = tpu.iota {dimensions = array<i32: 0>} : vector<3x3xi32>
    %14 = tpu.iota {dimensions = array<i32: 1>} : vector<3x3xi32>
    %15 = arith.cmpi eq, %13, %14 : vector<3x3xi32>
    %16 = arith.extui %15 : vector<3x3xi1> to vector<3x3xi32>
    %17 = arith.sitofp %16 : vector<3x3xi32> to vector<3x3xf32>
    %18 = arith.mulf %12, %17 : vector<3x3xf32>
    %cst_11 = arith.constant dense<0.000000e+00> : vector<3xf32>
    %19 = vector.multi_reduction <add>, %18, %cst_11 [0] : vector<3x3xf32> to vector<3xf32>
    %20 = vector.shape_cast %19 : vector<3xf32> to vector<1x3xf32>
    %21 = vector.extract_strided_slice %11 {offsets = [6, 0], sizes = [6, 3], strides = [1, 1]} : vector<12x3xf32> to vector<6x3xf32>
    %cst_12 = arith.constant 2.000000e+00 : f32
    %22 = vector.broadcast %cst_12 : f32 to vector<6x3xf32>
    %23 = arith.mulf %22, %21 : vector<6x3xf32>
    %24 = vector.broadcast %20 : vector<1x3xf32> to vector<6x3xf32>
    %25 = arith.subf %23, %24 : vector<6x3xf32>
    %cst_13 = arith.constant dense<0xFF800000> : vector<6xf32>
    %26 = vector.multi_reduction <maximumf>, %25, %cst_13 [1] : vector<6x3xf32> to vector<6xf32>
    %27 = vector.shape_cast %26 : vector<6xf32> to vector<6x1xf32>
    %28 = vector.broadcast %27 : vector<6x1xf32> to vector<6x3xf32>
    %29 = arith.subf %25, %28 : vector<6x3xf32>
    %30 = math.exp %29 : vector<6x3xf32>
    %cst_14 = arith.constant dense<0.000000e+00> : vector<6xf32>
    %31 = vector.multi_reduction <add>, %30, %cst_14 [1] : vector<6x3xf32> to vector<6xf32>
    %32 = vector.shape_cast %31 : vector<6xf32> to vector<6x1xf32>
    %33 = math.log %32 : vector<6x1xf32>
    %34 = arith.addf %27, %33 : vector<6x1xf32>
    %35 = vector.broadcast %34 : vector<6x1xf32> to vector<6x3xf32>
    %36 = arith.subf %25, %35 : vector<6x3xf32>
    %c0_15 = arith.constant 0 : index
    %c0_16 = arith.constant 0 : index
    %37 = vector.load %arg5[%c0_15, %c0_16] : memref<6x3xf32, #tpu.memory_space<vmem>>, vector<6x3xf32>
    tpu.vector_store %arg5[%c0_15, %c0_16], %36 {strides = array<i32>} : memref<6x3xf32, #tpu.memory_space<vmem>>, vector<6x3xf32>,
    return
  }
  func.func @transform_0(%arg0: i32) -> (i32, i32) {
    %c0_i32 = arith.constant 0 : i32
    %c0_i32_0 = arith.constant 0 : i32
    %c0_i32_1 = arith.constant 0 : i32
    return %c0_i32, %c0_i32_0 : i32, i32
  }
  func.func @transform_1(%arg0: i32) -> (i32, i32) {
    %c0_i32 = arith.constant 0 : i32
    %c0_i32_0 = arith.constant 0 : i32
    %c0_i32_1 = arith.constant 0 : i32
    return %c0_i32, %c0_i32_0 : i32, i32
  }
  func.func @transform_2(%arg0: i32) -> (i32, i32) {
    %c0_i32 = arith.constant 0 : i32
    %c0_i32_0 = arith.constant 0 : i32
    %c0_i32_1 = arith.constant 0 : i32
    return %c0_i32, %c0_i32_0 : i32, i32
  }
  func.func @transform_3(%arg0: i32) -> (i32, i32) {
    %c0_i32 = arith.constant 0 : i32
    %c0_i32_0 = arith.constant 0 : i32
    %c0_i32_1 = arith.constant 0 : i32
    return %c0_i32, %c0_i32_0 : i32, i32
  }
  func.func @transform_4(%arg0: i32) -> (i32, i32) {
    %c0_i32 = arith.constant 0 : i32
    %c0_i32_0 = arith.constant 0 : i32
    %c0_i32_1 = arith.constant 0 : i32
    return %c0_i32, %c0_i32_0 : i32, i32
  }
}

</mosaic_0001>

<llo_original>
// kernel: tpu_custom_call.1
$region0: #{tpu_custom_call.1}
  #allocation0 [shape = 'u32[]', space=smem, size = 0x4, offset = 0x4, fixed_abs, tag = 'smem constant byte address 0x4 - core index']
  #allocation1 [shape = 'u32[144,128]{1,0:T(1,128)}', space=vmem, size = 0x12000, scoped, tag = 'internal scratch']
  %s0 = inlined_call_operand.hbm [shape: bf16[192,216], index: 0, kind: input, shape index: {}]
  %s1 = inlined_call_operand.hbm [shape: bf16[216,128], index: 1, kind: input, shape index: {}]
  %s2 = inlined_call_operand.vmem [shape: f32[1,128], index: 2, kind: input, shape index: {}]
  %s3 = inlined_call_operand.vmem [shape: f32[3,12], index: 3, kind: input, shape index: {}]
  %s4 = inlined_call_operand.vmem [shape: f32[6,3], index: 4, kind: output, shape index: {}]
  %s5 = sld [smem:[#allocation0]]
  $region34: #{tpu_custom_call.1} parent=0
    _
  %s7 = ssub.s32 1, %s5
  %s8 = scalar_select 0, %s7, %s5
  $region1: #{tpu_custom_call.1} parent=0
    #allocation2 [shape = 'u8[98304]{0}', space=vmem, size = 0x18000, scoped, tag = 'input window, operand 0, single buffered']
    #allocation3 [shape = 's32[1]{0}', space=sflag, size = 0x4, scoped, tag = 'scoped memory for tpu_custom_call.1']
    #allocation4 [shape = 'u8[55296]{0}', space=vmem, size = 0xd800, scoped, tag = 'input window, operand 1, single buffered']
    #allocation5 [shape = 's32[1]{0}', space=sflag, size = 0x4, scoped, tag = 'scoped memory for tpu_custom_call.1']
    %9 = vsyncpa [#allocation3], 0
    %10 = vsyncpa [#allocation5], 0
    // Predicated region
    $region2: #{tpu_custom_call.1} parent=1 // pred_check
      _
    $region3: #{tpu_custom_call.1} parent=1 // pred_check_branch
      %12 = sbr.rel (0) target = $region5
    $region4: #{tpu_custom_call.1} parent=1 // pred_region
      %s14 = ssub.s32 3072, 3072
      %15 = vsyncadd [#allocation3], %s14
      %s16 = sshll.u32 [#allocation2], 4
      %s17 = int_to_ptr.vmem [resolvable:$true] %s16
      %22 = dma.hbm_to_vmem [thread:$0]  %s0, 3072, %s17, [#allocation3], 128, 128, 8
    $region5: #{tpu_custom_call.1} parent=1 // pred_fallthru
      _
    // Predicated region
    $region6: #{tpu_custom_call.1} parent=1 // pred_check
      _
    $region7: #{tpu_custom_call.1} parent=1 // pred_check_branch
      %24 = sbr.rel (0) target = $region9
    $region8: #{tpu_custom_call.1} parent=1 // pred_region
      %s26 = ssub.s32 1728, 1728
      %27 = vsyncadd [#allocation5], %s26
      %s28 = sshll.u32 [#allocation4], 4
      %s29 = int_to_ptr.vmem [resolvable:$true] %s28
      %34 = dma.hbm_to_vmem [thread:$0]  %s1, 1728, %s29, [#allocation5], 64, 64, 4
    $region9: #{tpu_custom_call.1} parent=1 // pred_fallthru
      _
    // Predicated region
    $region10: #{tpu_custom_call.1} parent=1 // pred_check
      _
    $region11: #{tpu_custom_call.1} parent=1 // pred_check_branch
      %36 = sbr.rel (0) target = $region13
    $region12: #{tpu_custom_call.1} parent=1 // pred_region
      _
    $region13: #{tpu_custom_call.1} parent=1 // pred_fallthru
      _
    // Predicated region
    $region14: #{tpu_custom_call.1} parent=1 // pred_check
      _
    $region15: #{tpu_custom_call.1} parent=1 // pred_check_branch
      %38 = sbr.rel (0) target = $region17
    $region16: #{tpu_custom_call.1} parent=1 // pred_region
      _
    $region17: #{tpu_custom_call.1} parent=1 // pred_fallthru
      _
    // Predicated region
    $region18: #{tpu_custom_call.1} parent=1 // pred_check
      _
    $region19: #{tpu_custom_call.1} parent=1 // pred_check_branch
      %40 = sbr.rel (0) target = $region21
    $region20: #{tpu_custom_call.1} parent=1 // pred_region
      %41 = dma.done [#allocation3], 3072
    $region21: #{tpu_custom_call.1} parent=1 // pred_fallthru
      _
    // Predicated region
    $region22: #{tpu_custom_call.1} parent=1 // pred_check
      _
    $region23: #{tpu_custom_call.1} parent=1 // pred_check_branch
      %43 = sbr.rel (0) target = $region25
    $region24: #{tpu_custom_call.1} parent=1 // pred_region
      %44 = dma.done [#allocation5], 1728
    $region25: #{tpu_custom_call.1} parent=1 // pred_fallthru
      _
    %v46 = vld [vmem:[#allocation2] sm:$0xff]
    %v47 = vld [vmem:[#allocation2 + $0x8] sm:$0xff]
    %v48 = vld [vmem:[#allocation2 + $0x10] sm:$0xff]
    %v49 = vld [vmem:[#allocation2 + $0x18] sm:$0xff]
    %v50 = vld [vmem:[#allocation2 + $0x20] sm:$0xff]
    %v51 = vld [vmem:[#allocation2 + $0x28] sm:$0xff]
    %v52 = vld [vmem:[#allocation2 + $0x30] sm:$0xff]
    %v53 = vld [vmem:[#allocation2 + $0x38] sm:$0xff]
    %v54 = vld [vmem:[#allocation2 + $0x40] sm:$0xff]
    %v55 = vld [vmem:[#allocation2 + $0x48] sm:$0xff]
    %v56 = vld [vmem:[#allocation2 + $0x50] sm:$0xff]
    %v57 = vld [vmem:[#allocation2 + $0x58] sm:$0xff]
    %v58 = vld [vmem:[#allocation2 + $0x60] sm:$0xff]
    %v59 = vld [vmem:[#allocation2 + $0x68] sm:$0xff]
    %v60 = vld [vmem:[#allocation2 + $0x70] sm:$0xff]
    %v61 = vld [vmem:[#allocation2 + $0x78] sm:$0xff]
    %v62 = vld [vmem:[#allocation2 + $0x80] sm:$0xff]
    %v63 = vld [vmem:[#allocation2 + $0x88] sm:$0xff]
    %v64 = vld [vmem:[#allocation2 + $0x90] sm:$0xff]
    %v65 = vld [vmem:[#allocation2 + $0x98] sm:$0xff]
    %v66 = vld [vmem:[#allocation2 + $0xa0] sm:$0xff]
    %v67 = vld [vmem:[#allocation2 + $0xa8] sm:$0xff]
    %v68 = vld [vmem:[#allocation2 + $0xb0] sm:$0xff]
    %v69 = vld [vmem:[#allocation2 + $0xb8] sm:$0xff]
    %v70 = vld [vmem:[#allocation4] sm:$0xf]
    %v71 = vld [vmem:[#allocation4 + $0x4] sm:$0xf]
    %v72 = vld [vmem:[#allocation4 + $0x8] sm:$0xf]
    %v73 = vld [vmem:[#allocation4 + $0xc] sm:$0xf]
    %v74 = vld [vmem:[#allocation4 + $0x10] sm:$0xf]
    %v75 = vld [vmem:[#allocation4 + $0x14] sm:$0xf]
    %v76 = vld [vmem:[#allocation4 + $0x18] sm:$0xf]
    %v77 = vld [vmem:[#allocation4 + $0x1c] sm:$0xf]
    %v78 = vld [vmem:[#allocation4 + $0x20] sm:$0xf]
    %v79 = vld [vmem:[#allocation4 + $0x24] sm:$0xf]
    %v80 = vld [vmem:[#allocation4 + $0x28] sm:$0xf]
    %v81 = vld [vmem:[#allocation4 + $0x2c] sm:$0xf]
    %v82 = vld [vmem:[#allocation4 + $0x30] sm:$0xf]
    %v83 = vld [vmem:[#allocation4 + $0x34] sm:$0xf]
    %v84 = vld [vmem:[#allocation4 + $0x38] sm:$0xf]
    %v85 = vld [vmem:[#allocation4 + $0x3c] sm:$0xf]
    %v86 = vld [vmem:[#allocation4 + $0x40] sm:$0xf]
    %v87 = vld [vmem:[#allocation4 + $0x44] sm:$0xf]
    %v88 = vld [vmem:[#allocation4 + $0x48] sm:$0xf]
    %v89 = vld [vmem:[#allocation4 + $0x4c] sm:$0xf]
    %v90 = vld [vmem:[#allocation4 + $0x50] sm:$0xf]
    %v91 = vld [vmem:[#allocation4 + $0x54] sm:$0xf]
    %v92 = vld [vmem:[#allocation4 + $0x58] sm:$0xf]
    %v93 = vld [vmem:[#allocation4 + $0x5c] sm:$0xf]
    %v94 = vld [vmem:[#allocation4 + $0x60] sm:$0xf]
    %v95 = vld [vmem:[#allocation4 + $0x64] sm:$0xf]
    %v96 = vld [vmem:[#allocation4 + $0x68] sm:$0xf]
    %v97 = vld [vmem:[%s2] sm:$0x1]
    %v99 = vlaneseq
    %v100 = vshrl.u32 %v99, 7
    %v101 = vsub.s32 0, %v100
    %v102 = vrot.slane %v97, %v101
    %v128 = vunpack.c.l.b16 %v46
    %v129 = vunpack.c.h.b16 %v46
    %v130 = vunpack.c.l.b16 %v47
    %v131 = vunpack.c.h.b16 %v47
    %v132 = vunpack.c.l.b16 %v48
    %v133 = vunpack.c.h.b16 %v48
    %v134 = vunpack.c.l.b16 %v49
    %v135 = vunpack.c.h.b16 %v49
    %v136 = vunpack.c.l.b16 %v50
    %v137 = vunpack.c.h.b16 %v50
    %v138 = vunpack.c.l.b16 %v51
    %v139 = vunpack.c.h.b16 %v51
    %v140 = vunpack.c.l.b16 %v52
    %v141 = vunpack.c.h.b16 %v52
    %v142 = vunpack.c.l.b16 %v53
    %v143 = vunpack.c.h.b16 %v53
    %v144 = vunpack.c.l.b16 %v54
    %v145 = vunpack.c.h.b16 %v54
    %v146 = vunpack.c.l.b16 %v55
    %v147 = vunpack.c.h.b16 %v55
    %v148 = vunpack.c.l.b16 %v56
    %v149 = vunpack.c.h.b16 %v56
    %v150 = vunpack.c.l.b16 %v57
    %v151 = vunpack.c.h.b16 %v57
    %v152 = vunpack.c.l.b16 %v58
    %v153 = vunpack.c.h.b16 %v58
    %v154 = vunpack.c.l.b16 %v59
    %v155 = vunpack.c.h.b16 %v59
    %v156 = vunpack.c.l.b16 %v60
    %v157 = vunpack.c.h.b16 %v60
    %v158 = vunpack.c.l.b16 %v61
    %v159 = vunpack.c.h.b16 %v61
    %v160 = vunpack.c.l.b16 %v62
    %v161 = vunpack.c.h.b16 %v62
    %v162 = vunpack.c.l.b16 %v63
    %v163 = vunpack.c.h.b16 %v63
    %v164 = vunpack.c.l.b16 %v64
    %v165 = vunpack.c.h.b16 %v64
    %v166 = vunpack.c.l.b16 %v65
    %v167 = vunpack.c.h.b16 %v65
    %v168 = vunpack.c.l.b16 %v66
    %v169 = vunpack.c.h.b16 %v66
    %v170 = vunpack.c.l.b16 %v67
    %v171 = vunpack.c.h.b16 %v67
    %v172 = vunpack.c.l.b16 %v68
    %v173 = vunpack.c.h.b16 %v68
    %v174 = vunpack.c.l.b16 %v69
    %v175 = vunpack.c.h.b16 %v69
    %v176 = vpack.c.b16 %v130, %v128
    %v177 = vpack.c.b16 %v131, %v129
    %v178 = vpack.c.b16 %v134, %v132
    %v179 = vpack.c.b16 %v135, %v133
    %v180 = vpack.c.b16 %v138, %v136
    %v181 = vpack.c.b16 %v139, %v137
    %v182 = vpack.c.b16 %v142, %v140
    %v183 = vpack.c.b16 %v143, %v141
    %v184 = vpack.c.b16 %v146, %v144
    %v185 = vpack.c.b16 %v147, %v145
    %v186 = vpack.c.b16 %v150, %v148
    %v187 = vpack.c.b16 %v151, %v149
    %v188 = vpack.c.b16 %v154, %v152
    %v189 = vpack.c.b16 %v155, %v153
    %v190 = vpack.c.b16 %v158, %v156
    %v191 = vpack.c.b16 %v159, %v157
    %v192 = vpack.c.b16 %v162, %v160
    %v193 = vpack.c.b16 %v163, %v161
    %v194 = vpack.c.b16 %v166, %v164
    %v195 = vpack.c.b16 %v167, %v165
    %v196 = vpack.c.b16 %v170, %v168
    %v197 = vpack.c.b16 %v171, %v169
    %v198 = vpack.c.b16 %v174, %v172
    %v199 = vpack.c.b16 %v175, %v173
    %v239 = vunpack.c.l.b16 %v70
    %v240 = vunpack.c.l.b16 %v71
    %v241 = vunpack.c.l.b16 %v72
    %v242 = vunpack.c.l.b16 %v73
    %v243 = vunpack.c.l.b16 %v74
    %v244 = vunpack.c.l.b16 %v75
    %v245 = vunpack.c.l.b16 %v76
    %v246 = vunpack.c.l.b16 %v77
    %v247 = vunpack.c.l.b16 %v78
    %v248 = vunpack.c.l.b16 %v79
    %v249 = vunpack.c.l.b16 %v80
    %v250 = vunpack.c.l.b16 %v81
    %v251 = vunpack.c.l.b16 %v82
    %v252 = vunpack.c.l.b16 %v83
    %v253 = vunpack.c.l.b16 %v84
    %v254 = vunpack.c.l.b16 %v85
    %v255 = vunpack.c.l.b16 %v86
    %v256 = vunpack.c.l.b16 %v87
    %v257 = vunpack.c.l.b16 %v88
    %v258 = vunpack.c.l.b16 %v89
    %v259 = vunpack.c.l.b16 %v90
    %v260 = vunpack.c.l.b16 %v91
    %v261 = vunpack.c.l.b16 %v92
    %v262 = vunpack.c.l.b16 %v93
    %v263 = vunpack.c.l.b16 %v94
    %v264 = vunpack.c.l.b16 %v95
    %v265 = vunpack.c.l.b16 %v96
    %v266 = vpack.c.b16 %v240, %v239
    %v267 = vpack.c.b16 %v242, %v241
    %v268 = vpack.c.b16 %v244, %v243
    %v269 = vpack.c.b16 %v246, %v245
    %v270 = vpack.c.b16 %v248, %v247
    %v271 = vpack.c.b16 %v250, %v249
    %v272 = vpack.c.b16 %v252, %v251
    %v273 = vpack.c.b16 %v254, %v253
    %v274 = vpack.c.b16 %v256, %v255
    %v275 = vpack.c.b16 %v258, %v257
    %v276 = vpack.c.b16 %v260, %v259
    %v277 = vpack.c.b16 %v262, %v261
    %v278 = vpack.c.b16 %v264, %v263
    %v279 = vpack.c.b16 %v265, %v265
    %vm293 = vcmask 719872
    %v295 = vsel %vm293, %v177, 0
    %v298 = vsel %vm293, %v179, 0
    %v301 = vsel %vm293, %v181, 0
    %v304 = vsel %vm293, %v183, 0
    %v307 = vsel %vm293, %v185, 0
    %v310 = vsel %vm293, %v187, 0
    %v313 = vsel %vm293, %v189, 0
    %v316 = vsel %vm293, %v191, 0
    %v319 = vsel %vm293, %v193, 0
    %v322 = vsel %vm293, %v195, 0
    %v325 = vsel %vm293, %v197, 0
    %v328 = vsel %vm293, %v199, 0
    %vm330 = vcmask 1043456
    %v332 = vsel %vm330, %v279, 0
    %334 = vmatprep.subr.bf16.mxu0 0
    %335 = vmatpush1.bf16.msra.mxu0 %v266
    %336 = vmatprep.subr.bf16.mxu0 0
    %337 = vmatpush1.bf16.msra.mxu0 %v267
    %338 = vmatprep.subr.bf16.mxu0 0
    %339 = vmatpush1.bf16.msra.mxu0 %v268
    %340 = vmatprep.subr.bf16.mxu0 0
    %341 = vmatpush1.bf16.msra.mxu0 %v269
    %342 = vmatprep.subr.bf16.mxu0 0
    %343 = vmatpush1.bf16.msra.mxu0 %v270
    %344 = vmatprep.subr.bf16.mxu0 0
    %345 = vmatpush1.bf16.msra.mxu0 %v271
    %346 = vmatprep.subr.bf16.mxu0 0
    %347 = vmatpush1.bf16.msra.mxu0 %v272
    %348 = vmatprep.subr.bf16.mxu0 0
    %349 = vmatpush1.bf16.msra.mxu0 %v273
    %350 = vmatprep.subr.bf16.mxu0 0
    %351 = vmatpush1.bf16.msra.mxu0 %v274
    %352 = vmatprep.subr.bf16.mxu0 0
    %353 = vmatpush1.bf16.msra.mxu0 %v275
    %354 = vmatprep.subr.bf16.mxu0 0
    %355 = vmatpush1.bf16.msra.mxu0 %v276
    %356 = vmatprep.subr.bf16.mxu0 0
    %357 = vmatpush1.bf16.msra.mxu0 %v277
    %358 = vmatprep.subr.bf16.mxu0 0
    %359 = vmatpush1.bf16.msra.mxu0 %v278
    %360 = vmatprep.subr.bf16.mxu0 0
    %361 = vmatpush1.bf16.msra.mxu0 %v332
    %362 = vmatprep.subr.bf16.mxu0 0
    %363 = vmatpush1.bf16.msra.mxu0 0
    %364 = vmatprep.subr.bf16.mxu0 0
    %365 = vmatpush1.bf16.msra.mxu0 0
    %366 = vmatprep.mubr.bf16.mxu0 %v295
    %367 = vmatmul.mubr.bf16.gmra.mrb[0].mxu0 %v176
    %v368 = vpop.f32.mrb[0].mxu0
    %v369 = vadd.f32 %v102, %v368
    %v370 = vpop.f32.mrb[0].mxu0
    %v371 = vpop.f32.mrb[0].mxu0
    %v372 = vadd.f32 %v102, %v371
    %v373 = vpop.f32.mrb[0].mxu0
    %374 = vmatprep.mubr.bf16.mxu0 %v298
    %375 = vmatmul.mubr.bf16.gmra.mrb[0].mxu0 %v178
    %v376 = vpop.f32.mrb[0].mxu0
    %v377 = vadd.f32 %v102, %v376
    %v378 = vpop.f32.mrb[0].mxu0
    %v379 = vpop.f32.mrb[0].mxu0
    %v380 = vadd.f32 %v102, %v379
    %v381 = vpop.f32.mrb[0].mxu0
    %382 = vmatprep.mubr.bf16.mxu0 %v301
    %383 = vmatmul.mubr.bf16.gmra.mrb[0].mxu0 %v180
    %v384 = vpop.f32.mrb[0].mxu0
    %v385 = vadd.f32 %v102, %v384
    %v386 = vpop.f32.mrb[0].mxu0
    %v387 = vpop.f32.mrb[0].mxu0
    %v388 = vadd.f32 %v102, %v387
    %v389 = vpop.f32.mrb[0].mxu0
    %390 = vmatprep.mubr.bf16.mxu0 %v304
    %391 = vmatmul.mubr.bf16.gmra.mrb[0].mxu0 %v182
    %v392 = vpop.f32.mrb[0].mxu0
    %v393 = vadd.f32 %v102, %v392
    %v394 = vpop.f32.mrb[0].mxu0
    %v395 = vpop.f32.mrb[0].mxu0
    %v396 = vadd.f32 %v102, %v395
    %v397 = vpop.f32.mrb[0].mxu0
    %398 = vmatprep.mubr.bf16.mxu0 %v307
    %399 = vmatmul.mubr.bf16.gmra.mrb[0].mxu0 %v184
    %v400 = vpop.f32.mrb[0].mxu0
    %v401 = vadd.f32 %v102, %v400
    %v402 = vpop.f32.mrb[0].mxu0
    %v403 = vpop.f32.mrb[0].mxu0
    %v404 = vadd.f32 %v102, %v403
    %v405 = vpop.f32.mrb[0].mxu0
    %406 = vmatprep.mubr.bf16.mxu0 %v310
    %407 = vmatmul.mubr.bf16.gmra.mrb[0].mxu0 %v186
    %v408 = vpop.f32.mrb[0].mxu0
    %v409 = vadd.f32 %v102, %v408
    %v410 = vpop.f32.mrb[0].mxu0
    %v411 = vpop.f32.mrb[0].mxu0
    %v412 = vadd.f32 %v102, %v411
    %v413 = vpop.f32.mrb[0].mxu0
    %414 = vmatprep.mubr.bf16.mxu0 %v313
    %415 = vmatmul.mubr.bf16.gmra.mrb[0].mxu0 %v188
    %v416 = vpop.f32.mrb[0].mxu0
    %v417 = vadd.f32 %v102, %v416
    %v418 = vpop.f32.mrb[0].mxu0
    %v419 = vpop.f32.mrb[0].mxu0
    %v420 = vadd.f32 %v102, %v419
    %v421 = vpop.f32.mrb[0].mxu0
    %422 = vmatprep.mubr.bf16.mxu0 %v316
    %423 = vmatmul.mubr.bf16.gmra.mrb[0].mxu0 %v190
    %v424 = vpop.f32.mrb[0].mxu0
    %v425 = vadd.f32 %v102, %v424
    %v426 = vpop.f32.mrb[0].mxu0
    %v427 = vpop.f32.mrb[0].mxu0
    %v428 = vadd.f32 %v102, %v427
    %v429 = vpop.f32.mrb[0].mxu0
    %430 = vmatprep.mubr.bf16.mxu0 %v319
    %431 = vmatmul.mubr.bf16.gmra.mrb[0].mxu0 %v192
    %v432 = vpop.f32.mrb[0].mxu0
    %v433 = vadd.f32 %v102, %v432
    %v434 = vpop.f32.mrb[0].mxu0
    %v435 = vpop.f32.mrb[0].mxu0
    %v436 = vadd.f32 %v102, %v435
    %v437 = vpop.f32.mrb[0].mxu0
    %438 = vmatprep.mubr.bf16.mxu0 %v322
    %439 = vmatmul.mubr.bf16.gmra.mrb[0].mxu0 %v194
    %v440 = vpop.f32.mrb[0].mxu0
    %v441 = vadd.f32 %v102, %v440
    %v442 = vpop.f32.mrb[0].mxu0
    %v443 = vpop.f32.mrb[0].mxu0
    %v444 = vadd.f32 %v102, %v443
    %v445 = vpop.f32.mrb[0].mxu0
    %446 = vmatprep.mubr.bf16.mxu0 %v325
    %447 = vmatmul.mubr.bf16.gmra.mrb[0].mxu0 %v196
    %v448 = vpop.f32.mrb[0].mxu0
    %v449 = vadd.f32 %v102, %v448
    %v450 = vpop.f32.mrb[0].mxu0
    %v451 = vpop.f32.mrb[0].mxu0
    %v452 = vadd.f32 %v102, %v451
    %v453 = vpop.f32.mrb[0].mxu0
    %454 = vmatprep.mubr.bf16.mxu0 %v328
    %455 = vmatmul.mubr.bf16.gmra.mrb[0].mxu0 %v198
    %v456 = vpop.f32.mrb[0].mxu0
    %v457 = vadd.f32 %v102, %v456
    %v458 = vpop.f32.mrb[0].mxu0
    %v459 = vpop.f32.mrb[0].mxu0
    %v460 = vadd.f32 %v102, %v459
    %v461 = vpop.f32.mrb[0].mxu0
    %462 = vdwg.mxu0
    %v463 = vmax.f32 %v369, 0.0
    %v464 = vmax.f32 %v372, 0.0
    %v465 = vmax.f32 %v377, 0.0
    %v466 = vmax.f32 %v380, 0.0
    %v467 = vmax.f32 %v385, 0.0
    %v468 = vmax.f32 %v388, 0.0
    %v469 = vmax.f32 %v393, 0.0
    %v470 = vmax.f32 %v396, 0.0
    %v471 = vmax.f32 %v401, 0.0
    %v472 = vmax.f32 %v404, 0.0
    %v473 = vmax.f32 %v409, 0.0
    %v474 = vmax.f32 %v412, 0.0
    %v475 = vmax.f32 %v417, 0.0
    %v476 = vmax.f32 %v420, 0.0
    %v477 = vmax.f32 %v425, 0.0
    %v478 = vmax.f32 %v428, 0.0
    %v479 = vmax.f32 %v433, 0.0
    %v480 = vmax.f32 %v436, 0.0
    %v481 = vmax.f32 %v441, 0.0
    %v482 = vmax.f32 %v444, 0.0
    %v483 = vmax.f32 %v449, 0.0
    %v484 = vmax.f32 %v452, 0.0
    %v485 = vmax.f32 %v457, 0.0
    %v486 = vmax.f32 %v460, 0.0
    %v487 = vld [vmem:[%s3] sm:$0x7]
    %v512 = vcombine.low %v463, %v465
    %v513 = vcombine.high %v463, %v465
    %v514 = vcombine.low %v467, %v469
    %v515 = vcombine.high %v467, %v469
    %v516 = vcombine.low %v471, %v473
    %v517 = vcombine.high %v471, %v473
    %v518 = vcombine.low %v475, %v477
    %v519 = vcombine.high %v475, %v477
    %v521 = vunpack.c.l.s4 1966171168
    %v522 = vunpack.c.0.s8 %v521
    %v523 = vlaneseq
    %v524 = vshrl.u32 %v523, 7
    %v525 = vsub.s32 %v522, %v524
    %v526 = vrot.slane %v512, %v525
    %v528 = vunpack.c.l.s4 1966171168
    %v529 = vunpack.c.0.s8 %v528
    %v530 = vlaneseq
    %v531 = vshrl.u32 %v530, 7
    %v532 = vsub.s32 %v529, %v531
    %v533 = vrot.slane %v513, %v532
    %v535 = vunpack.c.l.s4 1966171168
    %v536 = vunpack.c.0.s8 %v535
    %v537 = vlaneseq
    %v538 = vshrl.u32 %v537, 7
    %v539 = vsub.s32 %v536, %v538
    %v540 = vrot.slane %v514, %v539
    %v542 = vunpack.c.l.s4 1966171168
    %v543 = vunpack.c.0.s8 %v542
    %v544 = vlaneseq
    %v545 = vshrl.u32 %v544, 7
    %v546 = vsub.s32 %v543, %v545
    %v547 = vrot.slane %v515, %v546
    %v549 = vunpack.c.l.s4 1966171168
    %v550 = vunpack.c.0.s8 %v549
    %v551 = vlaneseq
    %v552 = vshrl.u32 %v551, 7
    %v553 = vsub.s32 %v550, %v552
    %v554 = vrot.slane %v516, %v553
    %v556 = vunpack.c.l.s4 1966171168
    %v557 = vunpack.c.0.s8 %v556
    %v558 = vlaneseq
    %v559 = vshrl.u32 %v558, 7
    %v560 = vsub.s32 %v557, %v559
    %v561 = vrot.slane %v517, %v560
    %v563 = vunpack.c.l.s4 1966171168
    %v564 = vunpack.c.0.s8 %v563
    %v565 = vlaneseq
    %v566 = vshrl.u32 %v565, 7
    %v567 = vsub.s32 %v564, %v566
    %v568 = vrot.slane %v518, %v567
    %v570 = vunpack.c.l.s4 1966171168
    %v571 = vunpack.c.0.s8 %v570
    %v572 = vlaneseq
    %v573 = vshrl.u32 %v572, 7
    %v574 = vsub.s32 %v571, %v573
    %v575 = vrot.slane %v519, %v574
    %v576 = vcombine.low %v526, %v540
    %v577 = vcombine.high %v526, %v540
    %v578 = vcombine.low %v533, %v547
    %v579 = vcombine.high %v533, %v547
    %v580 = vcombine.low %v554, %v568
    %v581 = vcombine.high %v554, %v568
    %v582 = vcombine.low %v561, %v575
    %v583 = vcombine.high %v561, %v575
    %v585 = vunpack.c.l.s4 1966171168
    %v586 = vunpack.c.0.s8 %v585
    %v587 = vlaneseq
    %v588 = vshrl.u32 %v587, 7
    %v589 = vsub.s32 %v586, %v588
    %v590 = vrot.slane %v576, %v589
    %v592 = vunpack.c.l.s4 1966171168
    %v593 = vunpack.c.0.s8 %v592
    %v594 = vlaneseq
    %v595 = vshrl.u32 %v594, 7
    %v596 = vsub.s32 %v593, %v595
    %v597 = vrot.slane %v578, %v596
    %v599 = vunpack.c.l.s4 1966171168
    %v600 = vunpack.c.0.s8 %v599
    %v601 = vlaneseq
    %v602 = vshrl.u32 %v601, 7
    %v603 = vsub.s32 %v600, %v602
    %v604 = vrot.slane %v577, %v603
    %v606 = vunpack.c.l.s4 1966171168
    %v607 = vunpack.c.0.s8 %v606
    %v608 = vlaneseq
    %v609 = vshrl.u32 %v608, 7
    %v610 = vsub.s32 %v607, %v609
    %v611 = vrot.slane %v579, %v610
    %v613 = vunpack.c.l.s4 1966171168
    %v614 = vunpack.c.0.s8 %v613
    %v615 = vlaneseq
    %v616 = vshrl.u32 %v615, 7
    %v617 = vsub.s32 %v614, %v616
    %v618 = vrot.slane %v580, %v617
    %v620 = vunpack.c.l.s4 1966171168
    %v621 = vunpack.c.0.s8 %v620
    %v622 = vlaneseq
    %v623 = vshrl.u32 %v622, 7
    %v624 = vsub.s32 %v621, %v623
    %v625 = vrot.slane %v582, %v624
    %v627 = vunpack.c.l.s4 1966171168
    %v628 = vunpack.c.0.s8 %v627
    %v629 = vlaneseq
    %v630 = vshrl.u32 %v629, 7
    %v631 = vsub.s32 %v628, %v630
    %v632 = vrot.slane %v581, %v631
    %v634 = vunpack.c.l.s4 1966171168
    %v635 = vunpack.c.0.s8 %v634
    %v636 = vlaneseq
    %v637 = vshrl.u32 %v636, 7
    %v638 = vsub.s32 %v635, %v637
    %v639 = vrot.slane %v583, %v638
    %v640 = vcombine.low %v590, %v618
    %v641 = vcombine.high %v590, %v618
    %v642 = vcombine.low %v597, %v625
    %v643 = vcombine.high %v597, %v625
    %v644 = vcombine.low %v604, %v632
    %v645 = vcombine.high %v604, %v632
    %v646 = vcombine.low %v611, %v639
    %v647 = vcombine.high %v611, %v639
    %v648 = vcombine.low %v464, %v466
    %v649 = vcombine.high %v464, %v466
    %v650 = vcombine.low %v468, %v470
    %v651 = vcombine.high %v468, %v470
    %v652 = vcombine.low %v472, %v474
    %v653 = vcombine.high %v472, %v474
    %v654 = vcombine.low %v476, %v478
    %v655 = vcombine.high %v476, %v478
    %v657 = vunpack.c.l.s4 1966171168
    %v658 = vunpack.c.0.s8 %v657
    %v659 = vlaneseq
    %v660 = vshrl.u32 %v659, 7
    %v661 = vsub.s32 %v658, %v660
    %v662 = vrot.slane %v648, %v661
    %v664 = vunpack.c.l.s4 1966171168
    %v665 = vunpack.c.0.s8 %v664
    %v666 = vlaneseq
    %v667 = vshrl.u32 %v666, 7
    %v668 = vsub.s32 %v665, %v667
    %v669 = vrot.slane %v649, %v668
    %v671 = vunpack.c.l.s4 1966171168
    %v672 = vunpack.c.0.s8 %v671
    %v673 = vlaneseq
    %v674 = vshrl.u32 %v673, 7
    %v675 = vsub.s32 %v672, %v674
    %v676 = vrot.slane %v650, %v675
    %v678 = vunpack.c.l.s4 1966171168
    %v679 = vunpack.c.0.s8 %v678
    %v680 = vlaneseq
    %v681 = vshrl.u32 %v680, 7
    %v682 = vsub.s32 %v679, %v681
    %v683 = vrot.slane %v651, %v682
    %v685 = vunpack.c.l.s4 1966171168
    %v686 = vunpack.c.0.s8 %v685
    %v687 = vlaneseq
    %v688 = vshrl.u32 %v687, 7
    %v689 = vsub.s32 %v686, %v688
    %v690 = vrot.slane %v652, %v689
    %v692 = vunpack.c.l.s4 1966171168
    %v693 = vunpack.c.0.s8 %v692
    %v694 = vlaneseq
    %v695 = vshrl.u32 %v694, 7
    %v696 = vsub.s32 %v693, %v695
    %v697 = vrot.slane %v653, %v696
    %v699 = vunpack.c.l.s4 1966171168
    %v700 = vunpack.c.0.s8 %v699
    %v701 = vlaneseq
    %v702 = vshrl.u32 %v701, 7
    %v703 = vsub.s32 %v700, %v702
    %v704 = vrot.slane %v654, %v703
    %v706 = vunpack.c.l.s4 1966171168
    %v707 = vunpack.c.0.s8 %v706
    %v708 = vlaneseq
    %v709 = vshrl.u32 %v708, 7
    %v710 = vsub.s32 %v707, %v709
    %v711 = vrot.slane %v655, %v710
    %v712 = vcombine.low %v662, %v676
    %v713 = vcombine.high %v662, %v676
    %v714 = vcombine.low %v669, %v683
    %v715 = vcombine.high %v669, %v683
    %v716 = vcombine.low %v690, %v704
    %v717 = vcombine.high %v690, %v704
    %v718 = vcombine.low %v697, %v711
    %v719 = vcombine.high %v697, %v711
    %v721 = vunpack.c.l.s4 1966171168
    %v722 = vunpack.c.0.s8 %v721
    %v723 = vlaneseq
    %v724 = vshrl.u32 %v723, 7
    %v725 = vsub.s32 %v722, %v724
    %v726 = vrot.slane %v712, %v725
    %v728 = vunpack.c.l.s4 1966171168
    %v729 = vunpack.c.0.s8 %v728
    %v730 = vlaneseq
    %v731 = vshrl.u32 %v730, 7
    %v732 = vsub.s32 %v729, %v731
    %v733 = vrot.slane %v714, %v732
    %v735 = vunpack.c.l.s4 1966171168
    %v736 = vunpack.c.0.s8 %v735
    %v737 = vlaneseq
    %v738 = vshrl.u32 %v737, 7
    %v739 = vsub.s32 %v736, %v738
    %v740 = vrot.slane %v713, %v739
    %v742 = vunpack.c.l.s4 1966171168
    %v743 = vunpack.c.0.s8 %v742
    %v744 = vlaneseq
    %v745 = vshrl.u32 %v744, 7
    %v746 = vsub.s32 %v743, %v745
    %v747 = vrot.slane %v715, %v746
    %v749 = vunpack.c.l.s4 1966171168
    %v750 = vunpack.c.0.s8 %v749
    %v751 = vlaneseq
    %v752 = vshrl.u32 %v751, 7
    %v753 = vsub.s32 %v750, %v752
    %v754 = vrot.slane %v716, %v753
    %v756 = vunpack.c.l.s4 1966171168
    %v757 = vunpack.c.0.s8 %v756
    %v758 = vlaneseq
    %v759 = vshrl.u32 %v758, 7
    %v760 = vsub.s32 %v757, %v759
    %v761 = vrot.slane %v718, %v760
    %v763 = vunpack.c.l.s4 1966171168
    %v764 = vunpack.c.0.s8 %v763
    %v765 = vlaneseq
    %v766 = vshrl.u32 %v765, 7
    %v767 = vsub.s32 %v764, %v766
    %v768 = vrot.slane %v717, %v767
    %v770 = vunpack.c.l.s4 1966171168
    %v771 = vunpack.c.0.s8 %v770
    %v772 = vlaneseq
    %v773 = vshrl.u32 %v772, 7
    %v774 = vsub.s32 %v771, %v773
    %v775 = vrot.slane %v719, %v774
    %v776 = vcombine.low %v726, %v754
    %v777 = vcombine.high %v726, %v754
    %v778 = vcombine.low %v733, %v761
    %v779 = vcombine.high %v733, %v761
    %v780 = vcombine.low %v740, %v768
    %v781 = vcombine.high %v740, %v768
    %v782 = vcombine.low %v747, %v775
    %v783 = vcombine.high %v747, %v775
    %v784 = vcombine.low %v479, %v481
    %v785 = vcombine.high %v479, %v481
    %v786 = vcombine.low %v483, %v485
    %v787 = vcombine.high %v483, %v485
    %v789 = vunpack.c.l.s4 1966171168
    %v790 = vunpack.c.0.s8 %v789
    %v791 = vlaneseq
    %v792 = vshrl.u32 %v791, 7
    %v793 = vsub.s32 %v790, %v792
    %v794 = vrot.slane %v784, %v793
    %v796 = vunpack.c.l.s4 1966171168
    %v797 = vunpack.c.0.s8 %v796
    %v798 = vlaneseq
    %v799 = vshrl.u32 %v798, 7
    %v800 = vsub.s32 %v797, %v799
    %v801 = vrot.slane %v785, %v800
    %v803 = vunpack.c.l.s4 1966171168
    %v804 = vunpack.c.0.s8 %v803
    %v805 = vlaneseq
    %v806 = vshrl.u32 %v805, 7
    %v807 = vsub.s32 %v804, %v806
    %v808 = vrot.slane %v786, %v807
    %v810 = vunpack.c.l.s4 1966171168
    %v811 = vunpack.c.0.s8 %v810
    %v812 = vlaneseq
    %v813 = vshrl.u32 %v812, 7
    %v814 = vsub.s32 %v811, %v813
    %v815 = vrot.slane %v787, %v814
    %v816 = vcombine.low %v794, %v808
    %v817 = vcombine.high %v794, %v808
    %v818 = vcombine.low %v801, %v815
    %v819 = vcombine.high %v801, %v815
    %v821 = vunpack.c.l.s4 1966171168
    %v822 = vunpack.c.0.s8 %v821
    %v823 = vlaneseq
    %v824 = vshrl.u32 %v823, 7
    %v825 = vsub.s32 %v822, %v824
    %v826 = vrot.slane %v816, %v825
    %v828 = vunpack.c.l.s4 1966171168
    %v829 = vunpack.c.0.s8 %v828
    %v830 = vlaneseq
    %v831 = vshrl.u32 %v830, 7
    %v832 = vsub.s32 %v829, %v831
    %v833 = vrot.slane %v818, %v832
    %v835 = vunpack.c.l.s4 1966171168
    %v836 = vunpack.c.0.s8 %v835
    %v837 = vlaneseq
    %v838 = vshrl.u32 %v837, 7
    %v839 = vsub.s32 %v836, %v838
    %v840 = vrot.slane %v817, %v839
    %v842 = vunpack.c.l.s4 1966171168
    %v843 = vunpack.c.0.s8 %v842
    %v844 = vlaneseq
    %v845 = vshrl.u32 %v844, 7
    %v846 = vsub.s32 %v843, %v845
    %v847 = vrot.slane %v819, %v846
    %v848 = vcombine.high %v826, %v826
    %v849 = vcombine.high %v833, %v833
    %v850 = vcombine.high %v840, %v840
    %v851 = vcombine.high %v847, %v847
    %v852 = vcombine.low %v480, %v482
    %v853 = vcombine.high %v480, %v482
    %v854 = vcombine.low %v484, %v486
    %v855 = vcombine.high %v484, %v486
    %v857 = vunpack.c.l.s4 1966171168
    %v858 = vunpack.c.0.s8 %v857
    %v859 = vlaneseq
    %v860 = vshrl.u32 %v859, 7
    %v861 = vsub.s32 %v858, %v860
    %v862 = vrot.slane %v852, %v861
    %v864 = vunpack.c.l.s4 1966171168
    %v865 = vunpack.c.0.s8 %v864
    %v866 = vlaneseq
    %v867 = vshrl.u32 %v866, 7
    %v868 = vsub.s32 %v865, %v867
    %v869 = vrot.slane %v853, %v868
    %v871 = vunpack.c.l.s4 1966171168
    %v872 = vunpack.c.0.s8 %v871
    %v873 = vlaneseq
    %v874 = vshrl.u32 %v873, 7
    %v875 = vsub.s32 %v872, %v874
    %v876 = vrot.slane %v854, %v875
    %v878 = vunpack.c.l.s4 1966171168
    %v879 = vunpack.c.0.s8 %v878
    %v880 = vlaneseq
    %v881 = vshrl.u32 %v880, 7
    %v882 = vsub.s32 %v879, %v881
    %v883 = vrot.slane %v855, %v882
    %v884 = vcombine.low %v862, %v876
    %v885 = vcombine.high %v862, %v876
    %v886 = vcombine.low %v869, %v883
    %v887 = vcombine.high %v869, %v883
    %v889 = vunpack.c.l.s4 1966171168
    %v890 = vunpack.c.0.s8 %v889
    %v891 = vlaneseq
    %v892 = vshrl.u32 %v891, 7
    %v893 = vsub.s32 %v890, %v892
    %v894 = vrot.slane %v884, %v893
    %v896 = vunpack.c.l.s4 1966171168
    %v897 = vunpack.c.0.s8 %v896
    %v898 = vlaneseq
    %v899 = vshrl.u32 %v898, 7
    %v900 = vsub.s32 %v897, %v899
    %v901 = vrot.slane %v886, %v900
    %v903 = vunpack.c.l.s4 1966171168
    %v904 = vunpack.c.0.s8 %v903
    %v905 = vlaneseq
    %v906 = vshrl.u32 %v905, 7
    %v907 = vsub.s32 %v904, %v906
    %v908 = vrot.slane %v885, %v907
    %v910 = vunpack.c.l.s4 1966171168
    %v911 = vunpack.c.0.s8 %v910
    %v912 = vlaneseq
    %v913 = vshrl.u32 %v912, 7
    %v914 = vsub.s32 %v911, %v913
    %v915 = vrot.slane %v887, %v914
    %v916 = vcombine.high %v894, %v894
    %v917 = vcombine.high %v901, %v901
    %v918 = vcombine.high %v908, %v908
    %v919 = vcombine.high %v915, %v915
    %vm936 = vcmask 97280
    %v938 = vsel %vm936, %v487, 0
    %v940 = vsel %vm330, %v826, 0
    %v942 = vsel %vm330, %v840, 0
    %v944 = vsel %vm330, %v848, 0
    %v946 = vsel %vm330, %v850, 0
    %v948 = vsel %vm330, %v833, 0
    %v950 = vsel %vm330, %v847, 0
    %v952 = vsel %vm330, %v849, 0
    %v954 = vsel %vm330, %v851, 0
    %v956 = vsel %vm330, %v894, 0
    %v958 = vsel %vm330, %v908, 0
    %v960 = vsel %vm330, %v916, 0
    %v962 = vsel %vm330, %v918, 0
    %v964 = vsel %vm330, %v901, 0
    %v966 = vsel %vm330, %v915, 0
    %v968 = vsel %vm330, %v917, 0
    %v970 = vsel %vm330, %v919, 0
    %972 = vmatprep.subr.mxu0 %v644
    %973 = vmatpush1.msra.mxu0 %v640
    %974 = vmatprep.subr.mxu0 %v942
    %975 = vmatpush1.msra.mxu0 %v940
    %976 = vmatprep.subr.mxu0 0.0
    %977 = vmatpush1.msra.mxu0 0.0
    %978 = vmatprep.subr.mxu0 0.0
    %979 = vmatpush1.msra.mxu0 0.0
    %980 = vmatprep.subr.mxu0 0.0
    %981 = vmatpush1.msra.mxu0 0.0
    %982 = vmatprep.subr.mxu0 0.0
    %983 = vmatpush1.msra.mxu0 0.0
    %984 = vmatprep.subr.mxu0 0.0
    %985 = vmatpush1.msra.mxu0 0.0
    %986 = vmatprep.subr.mxu0 0.0
    %987 = vmatpush1.msra.mxu0 0.0
    %988 = vmatprep.subr.mxu0 0.0
    %989 = vmatpush1.msra.mxu0 0.0
    %990 = vmatprep.subr.mxu0 0.0
    %991 = vmatpush1.msra.mxu0 0.0
    %992 = vmatprep.subr.mxu0 0.0
    %993 = vmatpush1.msra.mxu0 0.0
    %994 = vmatprep.subr.mxu0 0.0
    %995 = vmatpush1.msra.mxu0 0.0
    %996 = vmatprep.subr.mxu0 0.0
    %997 = vmatpush1.msra.mxu0 0.0
    %998 = vmatprep.subr.mxu0 0.0
    %999 = vmatpush1.msra.mxu0 0.0
    %1000 = vmatprep.subr.mxu0 0.0
    %1001 = vmatpush1.msra.mxu0 0.0
    %1002 = vmatprep.subr.mxu0 0.0
    %1003 = vmatpush1.msra.mxu0 0.0
    %1004 = vmatprep.subr.mxu0 0.0
    %1005 = vmatpush1.msra.mxu0 0.0
    %1006 = vmatprep.subr.mxu0 0.0
    %1007 = vmatpush1.msra.mxu0 0.0
    %1008 = vmatprep.subr.mxu0 0.0
    %1009 = vmatpush1.msra.mxu0 0.0
    %1010 = vmatprep.subr.mxu0 0.0
    %1011 = vmatpush1.msra.mxu0 0.0
    %1012 = vmatprep.subr.mxu0 0.0
    %1013 = vmatpush1.msra.mxu0 0.0
    %1014 = vmatprep.subr.mxu0 0.0
    %1015 = vmatpush1.msra.mxu0 0.0
    %1016 = vmatprep.subr.mxu0 0.0
    %1017 = vmatpush1.msra.mxu0 0.0
    %1018 = vmatprep.subr.mxu0 0.0
    %1019 = vmatpush1.msra.mxu0 0.0
    %1020 = vmatprep.subr.mxu0 0.0
    %1021 = vmatpush1.msra.mxu0 0.0
    %1022 = vmatprep.subr.mxu0 0.0
    %1023 = vmatpush1.msra.mxu0 0.0
    %1024 = vmatprep.subr.mxu0 0.0
    %1025 = vmatpush1.msra.mxu0 0.0
    %1026 = vmatprep.subr.mxu0 0.0
    %1027 = vmatpush1.msra.mxu0 0.0
    %1028 = vmatprep.subr.mxu0 0.0
    %1029 = vmatpush1.msra.mxu0 0.0
    %1030 = vmatprep.subr.mxu0 0.0
    %1031 = vmatpush1.msra.mxu0 0.0
    %1032 = vmatprep.subr.mxu0 0.0
    %1033 = vmatpush1.msra.mxu0 0.0
    %1034 = vmatprep.subr.mxu0 0.0
    %1035 = vmatpush1.msra.mxu0 0.0
    %1036 = vmatprep.mubr.f32.mxu0 0.0
    %1037 = vmatmul.mubr.f32.gmra.mrb[0].mxu0 %v938
    %v1038 = vpop.f32.mrb[0].mxu0
    %v1039 = vadd.f32 0.0, %v1038
    %v1040 = vpop.f32.mrb[0].mxu0
    %v1041 = vadd.f32 0.0, %v1040
    %1042 = vdwg.mxu0
    %1043 = vmatprep.subr.mxu0 %v645
    %1044 = vmatpush1.msra.mxu0 %v641
    %1045 = vmatprep.subr.mxu0 %v946
    %1046 = vmatpush1.msra.mxu0 %v944
    %1047 = vmatprep.subr.mxu0 0.0
    %1048 = vmatpush1.msra.mxu0 0.0
    %1049 = vmatprep.subr.mxu0 0.0
    %1050 = vmatpush1.msra.mxu0 0.0
    %1051 = vmatprep.subr.mxu0 0.0
    %1052 = vmatpush1.msra.mxu0 0.0
    %1053 = vmatprep.subr.mxu0 0.0
    %1054 = vmatpush1.msra.mxu0 0.0
    %1055 = vmatprep.subr.mxu0 0.0
    %1056 = vmatpush1.msra.mxu0 0.0
    %1057 = vmatprep.subr.mxu0 0.0
    %1058 = vmatpush1.msra.mxu0 0.0
    %1059 = vmatprep.subr.mxu0 0.0
    %1060 = vmatpush1.msra.mxu0 0.0
    %1061 = vmatprep.subr.mxu0 0.0
    %1062 = vmatpush1.msra.mxu0 0.0
    %1063 = vmatprep.subr.mxu0 0.0
    %1064 = vmatpush1.msra.mxu0 0.0
    %1065 = vmatprep.subr.mxu0 0.0
    %1066 = vmatpush1.msra.mxu0 0.0
    %1067 = vmatprep.subr.mxu0 0.0
    %1068 = vmatpush1.msra.mxu0 0.0
    %1069 = vmatprep.subr.mxu0 0.0
    %1070 = vmatpush1.msra.mxu0 0.0
    %1071 = vmatprep.subr.mxu0 0.0
    %1072 = vmatpush1.msra.mxu0 0.0
    %1073 = vmatprep.subr.mxu0 0.0
    %1074 = vmatpush1.msra.mxu0 0.0
    %1075 = vmatprep.subr.mxu0 0.0
    %1076 = vmatpush1.msra.mxu0 0.0
    %1077 = vmatprep.subr.mxu0 0.0
    %1078 = vmatpush1.msra.mxu0 0.0
    %1079 = vmatprep.subr.mxu0 0.0
    %1080 = vmatpush1.msra.mxu0 0.0
    %1081 = vmatprep.subr.mxu0 0.0
    %1082 = vmatpush1.msra.mxu0 0.0
    %1083 = vmatprep.subr.mxu0 0.0
    %1084 = vmatpush1.msra.mxu0 0.0
    %1085 = vmatprep.subr.mxu0 0.0
    %1086 = vmatpush1.msra.mxu0 0.0
    %1087 = vmatprep.subr.mxu0 0.0
    %1088 = vmatpush1.msra.mxu0 0.0
    %1089 = vmatprep.subr.mxu0 0.0
    %1090 = vmatpush1.msra.mxu0 0.0
    %1091 = vmatprep.subr.mxu0 0.0
    %1092 = vmatpush1.msra.mxu0 0.0
    %1093 = vmatprep.subr.mxu0 0.0
    %1094 = vmatpush1.msra.mxu0 0.0
    %1095 = vmatprep.subr.mxu0 0.0
    %1096 = vmatpush1.msra.mxu0 0.0
    %1097 = vmatprep.subr.mxu0 0.0
    %1098 = vmatpush1.msra.mxu0 0.0
    %1099 = vmatprep.subr.mxu0 0.0
    %1100 = vmatpush1.msra.mxu0 0.0
    %1101 = vmatprep.subr.mxu0 0.0
    %1102 = vmatpush1.msra.mxu0 0.0
    %1103 = vmatprep.subr.mxu0 0.0
    %1104 = vmatpush1.msra.mxu0 0.0
    %1105 = vmatprep.subr.mxu0 0.0
    %1106 = vmatpush1.msra.mxu0 0.0
    %1107 = vmatprep.mubr.f32.mxu0 0.0
    %1108 = vmatmul.mubr.f32.gmra.mrb[0].mxu0 %v938
    %v1109 = vpop.f32.mrb[0].mxu0
    %v1110 = vadd.f32 0.0, %v1109
    %v1111 = vpop.f32.mrb[0].mxu0
    %v1112 = vadd.f32 0.0, %v1111
    %1113 = vdwg.mxu0
    %1114 = vmatprep.subr.mxu0 %v646
    %1115 = vmatpush1.msra.mxu0 %v642
    %1116 = vmatprep.subr.mxu0 %v950
    %1117 = vmatpush1.msra.mxu0 %v948
    %1118 = vmatprep.subr.mxu0 0.0
    %1119 = vmatpush1.msra.mxu0 0.0
    %1120 = vmatprep.subr.mxu0 0.0
    %1121 = vmatpush1.msra.mxu0 0.0
    %1122 = vmatprep.subr.mxu0 0.0
    %1123 = vmatpush1.msra.mxu0 0.0
    %1124 = vmatprep.subr.mxu0 0.0
    %1125 = vmatpush1.msra.mxu0 0.0
    %1126 = vmatprep.subr.mxu0 0.0
    %1127 = vmatpush1.msra.mxu0 0.0
    %1128 = vmatprep.subr.mxu0 0.0
    %1129 = vmatpush1.msra.mxu0 0.0
    %1130 = vmatprep.subr.mxu0 0.0
    %1131 = vmatpush1.msra.mxu0 0.0
    %1132 = vmatprep.subr.mxu0 0.0
    %1133 = vmatpush1.msra.mxu0 0.0
    %1134 = vmatprep.subr.mxu0 0.0
    %1135 = vmatpush1.msra.mxu0 0.0
    %1136 = vmatprep.subr.mxu0 0.0
    %1137 = vmatpush1.msra.mxu0 0.0
    %1138 = vmatprep.subr.mxu0 0.0
    %1139 = vmatpush1.msra.mxu0 0.0
    %1140 = vmatprep.subr.mxu0 0.0
    %1141 = vmatpush1.msra.mxu0 0.0
    %1142 = vmatprep.subr.mxu0 0.0
    %1143 = vmatpush1.msra.mxu0 0.0
    %1144 = vmatprep.subr.mxu0 0.0
    %1145 = vmatpush1.msra.mxu0 0.0
    %1146 = vmatprep.subr.mxu0 0.0
    %1147 = vmatpush1.msra.mxu0 0.0
    %1148 = vmatprep.subr.mxu0 0.0
    %1149 = vmatpush1.msra.mxu0 0.0
    %1150 = vmatprep.subr.mxu0 0.0
    %1151 = vmatpush1.msra.mxu0 0.0
    %1152 = vmatprep.subr.mxu0 0.0
    %1153 = vmatpush1.msra.mxu0 0.0
    %1154 = vmatprep.subr.mxu0 0.0
    %1155 = vmatpush1.msra.mxu0 0.0
    %1156 = vmatprep.subr.mxu0 0.0
    %1157 = vmatpush1.msra.mxu0 0.0
    %1158 = vmatprep.subr.mxu0 0.0
    %1159 = vmatpush1.msra.mxu0 0.0
    %1160 = vmatprep.subr.mxu0 0.0
    %1161 = vmatpush1.msra.mxu0 0.0
    %1162 = vmatprep.subr.mxu0 0.0
    %1163 = vmatpush1.msra.mxu0 0.0
    %1164 = vmatprep.subr.mxu0 0.0
    %1165 = vmatpush1.msra.mxu0 0.0
    %1166 = vmatprep.subr.mxu0 0.0
    %1167 = vmatpush1.msra.mxu0 0.0
    %1168 = vmatprep.subr.mxu0 0.0
    %1169 = vmatpush1.msra.mxu0 0.0
    %1170 = vmatprep.subr.mxu0 0.0
    %1171 = vmatpush1.msra.mxu0 0.0
    %1172 = vmatprep.subr.mxu0 0.0
    %1173 = vmatpush1.msra.mxu0 0.0
    %1174 = vmatprep.subr.mxu0 0.0
    %1175 = vmatpush1.msra.mxu0 0.0
    %1176 = vmatprep.subr.mxu0 0.0
    %1177 = vmatpush1.msra.mxu0 0.0
    %1178 = vmatprep.mubr.f32.mxu0 0.0
    %1179 = vmatmul.mubr.f32.gmra.mrb[0].mxu0 %v938
    %v1180 = vpop.f32.mrb[0].mxu0
    %v1181 = vadd.f32 0.0, %v1180
    %v1182 = vpop.f32.mrb[0].mxu0
    %v1183 = vadd.f32 0.0, %v1182
    %1184 = vdwg.mxu0
    %1185 = vmatprep.subr.mxu0 %v647
    %1186 = vmatpush1.msra.mxu0 %v643
    %1187 = vmatprep.subr.mxu0 %v954
    %1188 = vmatpush1.msra.mxu0 %v952
    %1189 = vmatprep.subr.mxu0 0.0
    %1190 = vmatpush1.msra.mxu0 0.0
    %1191 = vmatprep.subr.mxu0 0.0
    %1192 = vmatpush1.msra.mxu0 0.0
    %1193 = vmatprep.subr.mxu0 0.0
    %1194 = vmatpush1.msra.mxu0 0.0
    %1195 = vmatprep.subr.mxu0 0.0
    %1196 = vmatpush1.msra.mxu0 0.0
    %1197 = vmatprep.subr.mxu0 0.0
    %1198 = vmatpush1.msra.mxu0 0.0
    %1199 = vmatprep.subr.mxu0 0.0
    %1200 = vmatpush1.msra.mxu0 0.0
    %1201 = vmatprep.subr.mxu0 0.0
    %1202 = vmatpush1.msra.mxu0 0.0
    %1203 = vmatprep.subr.mxu0 0.0
    %1204 = vmatpush1.msra.mxu0 0.0
    %1205 = vmatprep.subr.mxu0 0.0
    %1206 = vmatpush1.msra.mxu0 0.0
    %1207 = vmatprep.subr.mxu0 0.0
    %1208 = vmatpush1.msra.mxu0 0.0
    %1209 = vmatprep.subr.mxu0 0.0
    %1210 = vmatpush1.msra.mxu0 0.0
    %1211 = vmatprep.subr.mxu0 0.0
    %1212 = vmatpush1.msra.mxu0 0.0
    %1213 = vmatprep.subr.mxu0 0.0
    %1214 = vmatpush1.msra.mxu0 0.0
    %1215 = vmatprep.subr.mxu0 0.0
    %1216 = vmatpush1.msra.mxu0 0.0
    %1217 = vmatprep.subr.mxu0 0.0
    %1218 = vmatpush1.msra.mxu0 0.0
    %1219 = vmatprep.subr.mxu0 0.0
    %1220 = vmatpush1.msra.mxu0 0.0
    %1221 = vmatprep.subr.mxu0 0.0
    %1222 = vmatpush1.msra.mxu0 0.0
    %1223 = vmatprep.subr.mxu0 0.0
    %1224 = vmatpush1.msra.mxu0 0.0
    %1225 = vmatprep.subr.mxu0 0.0
    %1226 = vmatpush1.msra.mxu0 0.0
    %1227 = vmatprep.subr.mxu0 0.0
    %1228 = vmatpush1.msra.mxu0 0.0
    %1229 = vmatprep.subr.mxu0 0.0
    %1230 = vmatpush1.msra.mxu0 0.0
    %1231 = vmatprep.subr.mxu0 0.0
    %1232 = vmatpush1.msra.mxu0 0.0
    %1233 = vmatprep.subr.mxu0 0.0
    %1234 = vmatpush1.msra.mxu0 0.0
    %1235 = vmatprep.subr.mxu0 0.0
    %1236 = vmatpush1.msra.mxu0 0.0
    %1237 = vmatprep.subr.mxu0 0.0
    %1238 = vmatpush1.msra.mxu0 0.0
    %1239 = vmatprep.subr.mxu0 0.0
    %1240 = vmatpush1.msra.mxu0 0.0
    %1241 = vmatprep.subr.mxu0 0.0
    %1242 = vmatpush1.msra.mxu0 0.0
    %1243 = vmatprep.subr.mxu0 0.0
    %1244 = vmatpush1.msra.mxu0 0.0
    %1245 = vmatprep.subr.mxu0 0.0
    %1246 = vmatpush1.msra.mxu0 0.0
    %1247 = vmatprep.subr.mxu0 0.0
    %1248 = vmatpush1.msra.mxu0 0.0
    %1249 = vmatprep.mubr.f32.mxu0 0.0
    %1250 = vmatmul.mubr.f32.gmra.mrb[0].mxu0 %v938
    %v1251 = vpop.f32.mrb[0].mxu0
    %v1252 = vadd.f32 0.0, %v1251
    %v1253 = vpop.f32.mrb[0].mxu0
    %v1254 = vadd.f32 0.0, %v1253
    %1255 = vdwg.mxu0
    %1256 = vmatprep.subr.mxu0 %v780
    %1257 = vmatpush1.msra.mxu0 %v776
    %1258 = vmatprep.subr.mxu0 %v958
    %1259 = vmatpush1.msra.mxu0 %v956
    %1260 = vmatprep.subr.mxu0 0.0
    %1261 = vmatpush1.msra.mxu0 0.0
    %1262 = vmatprep.subr.mxu0 0.0
    %1263 = vmatpush1.msra.mxu0 0.0
    %1264 = vmatprep.subr.mxu0 0.0
    %1265 = vmatpush1.msra.mxu0 0.0
    %1266 = vmatprep.subr.mxu0 0.0
    %1267 = vmatpush1.msra.mxu0 0.0
    %1268 = vmatprep.subr.mxu0 0.0
    %1269 = vmatpush1.msra.mxu0 0.0
    %1270 = vmatprep.subr.mxu0 0.0
    %1271 = vmatpush1.msra.mxu0 0.0
    %1272 = vmatprep.subr.mxu0 0.0
    %1273 = vmatpush1.msra.mxu0 0.0
    %1274 = vmatprep.subr.mxu0 0.0
    %1275 = vmatpush1.msra.mxu0 0.0
    %1276 = vmatprep.subr.mxu0 0.0
    %1277 = vmatpush1.msra.mxu0 0.0
    %1278 = vmatprep.subr.mxu0 0.0
    %1279 = vmatpush1.msra.mxu0 0.0
    %1280 = vmatprep.subr.mxu0 0.0
    %1281 = vmatpush1.msra.mxu0 0.0
    %1282 = vmatprep.subr.mxu0 0.0
    %1283 = vmatpush1.msra.mxu0 0.0
    %1284 = vmatprep.subr.mxu0 0.0
    %1285 = vmatpush1.msra.mxu0 0.0
    %1286 = vmatprep.subr.mxu0 0.0
    %1287 = vmatpush1.msra.mxu0 0.0
    %1288 = vmatprep.subr.mxu0 0.0
    %1289 = vmatpush1.msra.mxu0 0.0
    %1290 = vmatprep.subr.mxu0 0.0
    %1291 = vmatpush1.msra.mxu0 0.0
    %1292 = vmatprep.subr.mxu0 0.0
    %1293 = vmatpush1.msra.mxu0 0.0
    %1294 = vmatprep.subr.mxu0 0.0
    %1295 = vmatpush1.msra.mxu0 0.0
    %1296 = vmatprep.subr.mxu0 0.0
    %1297 = vmatpush1.msra.mxu0 0.0
    %1298 = vmatprep.subr.mxu0 0.0
    %1299 = vmatpush1.msra.mxu0 0.0
    %1300 = vmatprep.subr.mxu0 0.0
    %1301 = vmatpush1.msra.mxu0 0.0
    %1302 = vmatprep.subr.mxu0 0.0
    %1303 = vmatpush1.msra.mxu0 0.0
    %1304 = vmatprep.subr.mxu0 0.0
    %1305 = vmatpush1.msra.mxu0 0.0
    %1306 = vmatprep.subr.mxu0 0.0
    %1307 = vmatpush1.msra.mxu0 0.0
    %1308 = vmatprep.subr.mxu0 0.0
    %1309 = vmatpush1.msra.mxu0 0.0
    %1310 = vmatprep.subr.mxu0 0.0
    %1311 = vmatpush1.msra.mxu0 0.0
    %1312 = vmatprep.subr.mxu0 0.0
    %1313 = vmatpush1.msra.mxu0 0.0
    %1314 = vmatprep.subr.mxu0 0.0
    %1315 = vmatpush1.msra.mxu0 0.0
    %1316 = vmatprep.subr.mxu0 0.0
    %1317 = vmatpush1.msra.mxu0 0.0
    %1318 = vmatprep.subr.mxu0 0.0
    %1319 = vmatpush1.msra.mxu0 0.0
    %1320 = vmatprep.mubr.f32.mxu0 0.0
    %1321 = vmatmul.mubr.f32.gmra.mrb[0].mxu0 %v938
    %v1322 = vpop.f32.mrb[0].mxu0
    %v1323 = vadd.f32 0.0, %v1322
    %v1324 = vpop.f32.mrb[0].mxu0
    %v1325 = vadd.f32 0.0, %v1324
    %1326 = vdwg.mxu0
    %1327 = vmatprep.subr.mxu0 %v781
    %1328 = vmatpush1.msra.mxu0 %v777
    %1329 = vmatprep.subr.mxu0 %v962
    %1330 = vmatpush1.msra.mxu0 %v960
    %1331 = vmatprep.subr.mxu0 0.0
    %1332 = vmatpush1.msra.mxu0 0.0
    %1333 = vmatprep.subr.mxu0 0.0
    %1334 = vmatpush1.msra.mxu0 0.0
    %1335 = vmatprep.subr.mxu0 0.0
    %1336 = vmatpush1.msra.mxu0 0.0
    %1337 = vmatprep.subr.mxu0 0.0
    %1338 = vmatpush1.msra.mxu0 0.0
    %1339 = vmatprep.subr.mxu0 0.0
    %1340 = vmatpush1.msra.mxu0 0.0
    %1341 = vmatprep.subr.mxu0 0.0
    %1342 = vmatpush1.msra.mxu0 0.0
    %1343 = vmatprep.subr.mxu0 0.0
    %1344 = vmatpush1.msra.mxu0 0.0
    %1345 = vmatprep.subr.mxu0 0.0
    %1346 = vmatpush1.msra.mxu0 0.0
    %1347 = vmatprep.subr.mxu0 0.0
    %1348 = vmatpush1.msra.mxu0 0.0
    %1349 = vmatprep.subr.mxu0 0.0
    %1350 = vmatpush1.msra.mxu0 0.0
    %1351 = vmatprep.subr.mxu0 0.0
    %1352 = vmatpush1.msra.mxu0 0.0
    %1353 = vmatprep.subr.mxu0 0.0
    %1354 = vmatpush1.msra.mxu0 0.0
    %1355 = vmatprep.subr.mxu0 0.0
    %1356 = vmatpush1.msra.mxu0 0.0
    %1357 = vmatprep.subr.mxu0 0.0
    %1358 = vmatpush1.msra.mxu0 0.0
    %1359 = vmatprep.subr.mxu0 0.0
    %1360 = vmatpush1.msra.mxu0 0.0
    %1361 = vmatprep.subr.mxu0 0.0
    %1362 = vmatpush1.msra.mxu0 0.0
    %1363 = vmatprep.subr.mxu0 0.0
    %1364 = vmatpush1.msra.mxu0 0.0
    %1365 = vmatprep.subr.mxu0 0.0
    %1366 = vmatpush1.msra.mxu0 0.0
    %1367 = vmatprep.subr.mxu0 0.0
    %1368 = vmatpush1.msra.mxu0 0.0
    %1369 = vmatprep.subr.mxu0 0.0
    %1370 = vmatpush1.msra.mxu0 0.0
    %1371 = vmatprep.subr.mxu0 0.0
    %1372 = vmatpush1.msra.mxu0 0.0
    %1373 = vmatprep.subr.mxu0 0.0
    %1374 = vmatpush1.msra.mxu0 0.0
    %1375 = vmatprep.subr.mxu0 0.0
    %1376 = vmatpush1.msra.mxu0 0.0
    %1377 = vmatprep.subr.mxu0 0.0
    %1378 = vmatpush1.msra.mxu0 0.0
    %1379 = vmatprep.subr.mxu0 0.0
    %1380 = vmatpush1.msra.mxu0 0.0
    %1381 = vmatprep.subr.mxu0 0.0
    %1382 = vmatpush1.msra.mxu0 0.0
    %1383 = vmatprep.subr.mxu0 0.0
    %1384 = vmatpush1.msra.mxu0 0.0
    %1385 = vmatprep.subr.mxu0 0.0
    %1386 = vmatpush1.msra.mxu0 0.0
    %1387 = vmatprep.subr.mxu0 0.0
    %1388 = vmatpush1.msra.mxu0 0.0
    %1389 = vmatprep.subr.mxu0 0.0
    %1390 = vmatpush1.msra.mxu0 0.0
    %1391 = vmatprep.mubr.f32.mxu0 0.0
    %1392 = vmatmul.mubr.f32.gmra.mrb[0].mxu0 %v938
    %v1393 = vpop.f32.mrb[0].mxu0
    %v1394 = vadd.f32 0.0, %v1393
    %v1395 = vpop.f32.mrb[0].mxu0
    %v1396 = vadd.f32 0.0, %v1395
    %1397 = vdwg.mxu0
    %1398 = vmatprep.subr.mxu0 %v782
    %1399 = vmatpush1.msra.mxu0 %v778
    %1400 = vmatprep.subr.mxu0 %v966
    %1401 = vmatpush1.msra.mxu0 %v964
    %1402 = vmatprep.subr.mxu0 0.0
    %1403 = vmatpush1.msra.mxu0 0.0
    %1404 = vmatprep.subr.mxu0 0.0
    %1405 = vmatpush1.msra.mxu0 0.0
    %1406 = vmatprep.subr.mxu0 0.0
    %1407 = vmatpush1.msra.mxu0 0.0
    %1408 = vmatprep.subr.mxu0 0.0
    %1409 = vmatpush1.msra.mxu0 0.0
    %1410 = vmatprep.subr.mxu0 0.0
    %1411 = vmatpush1.msra.mxu0 0.0
    %1412 = vmatprep.subr.mxu0 0.0
    %1413 = vmatpush1.msra.mxu0 0.0
    %1414 = vmatprep.subr.mxu0 0.0
    %1415 = vmatpush1.msra.mxu0 0.0
    %1416 = vmatprep.subr.mxu0 0.0
    %1417 = vmatpush1.msra.mxu0 0.0
    %1418 = vmatprep.subr.mxu0 0.0
    %1419 = vmatpush1.msra.mxu0 0.0
    %1420 = vmatprep.subr.mxu0 0.0
    %1421 = vmatpush1.msra.mxu0 0.0
    %1422 = vmatprep.subr.mxu0 0.0
    %1423 = vmatpush1.msra.mxu0 0.0
    %1424 = vmatprep.subr.mxu0 0.0
    %1425 = vmatpush1.msra.mxu0 0.0
    %1426 = vmatprep.subr.mxu0 0.0
    %1427 = vmatpush1.msra.mxu0 0.0
    %1428 = vmatprep.subr.mxu0 0.0
    %1429 = vmatpush1.msra.mxu0 0.0
    %1430 = vmatprep.subr.mxu0 0.0
    %1431 = vmatpush1.msra.mxu0 0.0
    %1432 = vmatprep.subr.mxu0 0.0
    %1433 = vmatpush1.msra.mxu0 0.0
    %1434 = vmatprep.subr.mxu0 0.0
    %1435 = vmatpush1.msra.mxu0 0.0
    %1436 = vmatprep.subr.mxu0 0.0
    %1437 = vmatpush1.msra.mxu0 0.0
    %1438 = vmatprep.subr.mxu0 0.0
    %1439 = vmatpush1.msra.mxu0 0.0
    %1440 = vmatprep.subr.mxu0 0.0
    %1441 = vmatpush1.msra.mxu0 0.0
    %1442 = vmatprep.subr.mxu0 0.0
    %1443 = vmatpush1.msra.mxu0 0.0
    %1444 = vmatprep.subr.mxu0 0.0
    %1445 = vmatpush1.msra.mxu0 0.0
    %1446 = vmatprep.subr.mxu0 0.0
    %1447 = vmatpush1.msra.mxu0 0.0
    %1448 = vmatprep.subr.mxu0 0.0
    %1449 = vmatpush1.msra.mxu0 0.0
    %1450 = vmatprep.subr.mxu0 0.0
    %1451 = vmatpush1.msra.mxu0 0.0
    %1452 = vmatprep.subr.mxu0 0.0
    %1453 = vmatpush1.msra.mxu0 0.0
    %1454 = vmatprep.subr.mxu0 0.0
    %1455 = vmatpush1.msra.mxu0 0.0
    %1456 = vmatprep.subr.mxu0 0.0
    %1457 = vmatpush1.msra.mxu0 0.0
    %1458 = vmatprep.subr.mxu0 0.0
    %1459 = vmatpush1.msra.mxu0 0.0
    %1460 = vmatprep.subr.mxu0 0.0
    %1461 = vmatpush1.msra.mxu0 0.0
    %1462 = vmatprep.mubr.f32.mxu0 0.0
    %1463 = vmatmul.mubr.f32.gmra.mrb[0].mxu0 %v938
    %v1464 = vpop.f32.mrb[0].mxu0
    %v1465 = vadd.f32 0.0, %v1464
    %v1466 = vpop.f32.mrb[0].mxu0
    %v1467 = vadd.f32 0.0, %v1466
    %1468 = vdwg.mxu0
    %1469 = vmatprep.subr.mxu0 %v783
    %1470 = vmatpush1.msra.mxu0 %v779
    %1471 = vmatprep.subr.mxu0 %v970
    %1472 = vmatpush1.msra.mxu0 %v968
    %1473 = vmatprep.subr.mxu0 0.0
    %1474 = vmatpush1.msra.mxu0 0.0
    %1475 = vmatprep.subr.mxu0 0.0
    %1476 = vmatpush1.msra.mxu0 0.0
    %1477 = vmatprep.subr.mxu0 0.0
    %1478 = vmatpush1.msra.mxu0 0.0
    %1479 = vmatprep.subr.mxu0 0.0
    %1480 = vmatpush1.msra.mxu0 0.0
    %1481 = vmatprep.subr.mxu0 0.0
    %1482 = vmatpush1.msra.mxu0 0.0
    %1483 = vmatprep.subr.mxu0 0.0
    %1484 = vmatpush1.msra.mxu0 0.0
    %1485 = vmatprep.subr.mxu0 0.0
    %1486 = vmatpush1.msra.mxu0 0.0
    %1487 = vmatprep.subr.mxu0 0.0
    %1488 = vmatpush1.msra.mxu0 0.0
    %1489 = vmatprep.subr.mxu0 0.0
    %1490 = vmatpush1.msra.mxu0 0.0
    %1491 = vmatprep.subr.mxu0 0.0
    %1492 = vmatpush1.msra.mxu0 0.0
    %1493 = vmatprep.subr.mxu0 0.0
    %1494 = vmatpush1.msra.mxu0 0.0
    %1495 = vmatprep.subr.mxu0 0.0
    %1496 = vmatpush1.msra.mxu0 0.0
    %1497 = vmatprep.subr.mxu0 0.0
    %1498 = vmatpush1.msra.mxu0 0.0
    %1499 = vmatprep.subr.mxu0 0.0
    %1500 = vmatpush1.msra.mxu0 0.0
    %1501 = vmatprep.subr.mxu0 0.0
    %1502 = vmatpush1.msra.mxu0 0.0
    %1503 = vmatprep.subr.mxu0 0.0
    %1504 = vmatpush1.msra.mxu0 0.0
    %1505 = vmatprep.subr.mxu0 0.0
    %1506 = vmatpush1.msra.mxu0 0.0
    %1507 = vmatprep.subr.mxu0 0.0
    %1508 = vmatpush1.msra.mxu0 0.0
    %1509 = vmatprep.subr.mxu0 0.0
    %1510 = vmatpush1.msra.mxu0 0.0
    %1511 = vmatprep.subr.mxu0 0.0
    %1512 = vmatpush1.msra.mxu0 0.0
    %1513 = vmatprep.subr.mxu0 0.0
    %1514 = vmatpush1.msra.mxu0 0.0
    %1515 = vmatprep.subr.mxu0 0.0
    %1516 = vmatpush1.msra.mxu0 0.0
    %1517 = vmatprep.subr.mxu0 0.0
    %1518 = vmatpush1.msra.mxu0 0.0
    %1519 = vmatprep.subr.mxu0 0.0
    %1520 = vmatpush1.msra.mxu0 0.0
    %1521 = vmatprep.subr.mxu0 0.0
    %1522 = vmatpush1.msra.mxu0 0.0
    %1523 = vmatprep.subr.mxu0 0.0
    %1524 = vmatpush1.msra.mxu0 0.0
    %1525 = vmatprep.subr.mxu0 0.0
    %1526 = vmatpush1.msra.mxu0 0.0
    %1527 = vmatprep.subr.mxu0 0.0
    %1528 = vmatpush1.msra.mxu0 0.0
    %1529 = vmatprep.subr.mxu0 0.0
    %1530 = vmatpush1.msra.mxu0 0.0
    %1531 = vmatprep.subr.mxu0 0.0
    %1532 = vmatpush1.msra.mxu0 0.0
    %1533 = vmatprep.mubr.f32.mxu0 0.0
    %1534 = vmatmul.mubr.f32.gmra.mrb[0].mxu0 %v938
    %v1535 = vpop.f32.mrb[0].mxu0
    %v1536 = vadd.f32 0.0, %v1535
    %v1537 = vpop.f32.mrb[0].mxu0
    %v1538 = vadd.f32 0.0, %v1537
    %1539 = vdwg.mxu0
    %1556 = vmatprep.subr.mxu0 %v1041
    %1557 = vmatpush1.xpose.msra.mxu0 %v1039
    %1558 = vmatprep.subr.mxu0 0.0
    %1559 = vmatpush1.xpose.msra.mxu0 0.0
    %1560 = vmatprep.subr.mxu0 0.0
    %1561 = vmatpush1.xpose.msra.mxu0 0.0
    %1562 = vmatprep.subr.mxu0 0.0
    %1563 = vmatpush1.xpose.msra.mxu0 0.0
    %1564 = vmatprep.subr.mxu0 0.0
    %1565 = vmatpush1.xpose.msra.mxu0 0.0
    %1566 = vmatprep.subr.mxu0 0.0
    %1567 = vmatpush1.xpose.msra.mxu0 0.0
    %1568 = vmatprep.subr.mxu0 0.0
    %1569 = vmatpush1.xpose.msra.mxu0 0.0
    %1570 = vmatprep.subr.mxu0 0.0
    %1571 = vmatpush1.xpose.msra.mxu0 0.0
    %1572 = vmatprep.subr.mxu0 0.0
    %1573 = vmatpush1.xpose.msra.mxu0 0.0
    %1574 = vmatprep.subr.mxu0 0.0
    %1575 = vmatpush1.xpose.msra.mxu0 0.0
    %1576 = vmatprep.subr.mxu0 0.0
    %1577 = vmatpush1.xpose.msra.mxu0 0.0
    %1578 = vmatprep.subr.mxu0 0.0
    %1579 = vmatpush1.xpose.msra.mxu0 0.0
    %1580 = vmatprep.subr.mxu0 0.0
    %1581 = vmatpush1.xpose.msra.mxu0 0.0
    %1582 = vmatprep.subr.mxu0 0.0
    %1583 = vmatpush1.xpose.msra.mxu0 0.0
    %1584 = vmatprep.subr.mxu0 0.0
    %1585 = vmatpush1.xpose.msra.mxu0 0.0
    %1586 = vmatprep.subr.mxu0 0.0
    %1587 = vmatpush1.xpose.msra.mxu0 0.0
    %1588 = vmatprep.subr.mxu0 0.0
    %1589 = vmatpush1.xpose.msra.mxu0 0.0
    %1590 = vmatprep.subr.mxu0 0.0
    %1591 = vmatpush1.xpose.msra.mxu0 0.0
    %1592 = vmatprep.subr.mxu0 0.0
    %1593 = vmatpush1.xpose.msra.mxu0 0.0
    %1594 = vmatprep.subr.mxu0 0.0
    %1595 = vmatpush1.xpose.msra.mxu0 0.0
    %1596 = vmatprep.subr.mxu0 0.0
    %1597 = vmatpush1.xpose.msra.mxu0 0.0
    %1598 = vmatprep.subr.mxu0 0.0
    %1599 = vmatpush1.xpose.msra.mxu0 0.0
    %1600 = vmatprep.subr.mxu0 0.0
    %1601 = vmatpush1.xpose.msra.mxu0 0.0
    %1602 = vmatprep.subr.mxu0 0.0
    %1603 = vmatpush1.xpose.msra.mxu0 0.0
    %1604 = vmatprep.subr.mxu0 0.0
    %1605 = vmatpush1.xpose.msra.mxu0 0.0
    %1606 = vmatprep.subr.mxu0 0.0
    %1607 = vmatpush1.xpose.msra.mxu0 0.0
    %1608 = vmatprep.subr.mxu0 0.0
    %1609 = vmatpush1.xpose.msra.mxu0 0.0
    %1610 = vmatprep.subr.mxu0 0.0
    %1611 = vmatpush1.xpose.msra.mxu0 0.0
    %1612 = vmatprep.subr.mxu0 0.0
    %1613 = vmatpush1.xpose.msra.mxu0 0.0
    %1614 = vmatprep.subr.mxu0 0.0
    %1615 = vmatpush1.xpose.msra.mxu0 0.0
    %1616 = vmatprep.subr.mxu0 0.0
    %1617 = vmatpush1.xpose.msra.mxu0 0.0
    %1618 = vmatprep.subr.mxu0 0.0
    %1619 = vmatpush1.xpose.msra.mxu0 0.0
    %1620 = vmatprep.mubr.f32.mxu0 %v644
    %1621 = vmatmul.mubr.f32.gmra.mrb[0].mxu0 %v640
    %v1622 = vpop.f32.mrb[0].mxu0
    %v1623 = vadd.f32 0.0, %v1622
    %v1624 = vpop.f32.mrb[0].mxu0
    %1625 = vmatprep.mubr.f32.mxu0 %v840
    %1626 = vmatmul.mubr.f32.gmra.mrb[0].mxu0 %v826
    %v1627 = vpop.f32.mrb[0].mxu0
    %v1628 = vadd.f32 0.0, %v1627
    %v1629 = vpop.f32.mrb[0].mxu0
    %1630 = vdwg.mxu0
    %1631 = vmatprep.subr.mxu0 %v1112
    %1632 = vmatpush1.xpose.msra.mxu0 %v1110
    %1633 = vmatprep.subr.mxu0 0.0
    %1634 = vmatpush1.xpose.msra.mxu0 0.0
    %1635 = vmatprep.subr.mxu0 0.0
    %1636 = vmatpush1.xpose.msra.mxu0 0.0
    %1637 = vmatprep.subr.mxu0 0.0
    %1638 = vmatpush1.xpose.msra.mxu0 0.0
    %1639 = vmatprep.subr.mxu0 0.0
    %1640 = vmatpush1.xpose.msra.mxu0 0.0
    %1641 = vmatprep.subr.mxu0 0.0
    %1642 = vmatpush1.xpose.msra.mxu0 0.0
    %1643 = vmatprep.subr.mxu0 0.0
    %1644 = vmatpush1.xpose.msra.mxu0 0.0
    %1645 = vmatprep.subr.mxu0 0.0
    %1646 = vmatpush1.xpose.msra.mxu0 0.0
    %1647 = vmatprep.subr.mxu0 0.0
    %1648 = vmatpush1.xpose.msra.mxu0 0.0
    %1649 = vmatprep.subr.mxu0 0.0
    %1650 = vmatpush1.xpose.msra.mxu0 0.0
    %1651 = vmatprep.subr.mxu0 0.0
    %1652 = vmatpush1.xpose.msra.mxu0 0.0
    %1653 = vmatprep.subr.mxu0 0.0
    %1654 = vmatpush1.xpose.msra.mxu0 0.0
    %1655 = vmatprep.subr.mxu0 0.0
    %1656 = vmatpush1.xpose.msra.mxu0 0.0
    %1657 = vmatprep.subr.mxu0 0.0
    %1658 = vmatpush1.xpose.msra.mxu0 0.0
    %1659 = vmatprep.subr.mxu0 0.0
    %1660 = vmatpush1.xpose.msra.mxu0 0.0
    %1661 = vmatprep.subr.mxu0 0.0
    %1662 = vmatpush1.xpose.msra.mxu0 0.0
    %1663 = vmatprep.subr.mxu0 0.0
    %1664 = vmatpush1.xpose.msra.mxu0 0.0
    %1665 = vmatprep.subr.mxu0 0.0
    %1666 = vmatpush1.xpose.msra.mxu0 0.0
    %1667 = vmatprep.subr.mxu0 0.0
    %1668 = vmatpush1.xpose.msra.mxu0 0.0
    %1669 = vmatprep.subr.mxu0 0.0
    %1670 = vmatpush1.xpose.msra.mxu0 0.0
    %1671 = vmatprep.subr.mxu0 0.0
    %1672 = vmatpush1.xpose.msra.mxu0 0.0
    %1673 = vmatprep.subr.mxu0 0.0
    %1674 = vmatpush1.xpose.msra.mxu0 0.0
    %1675 = vmatprep.subr.mxu0 0.0
    %1676 = vmatpush1.xpose.msra.mxu0 0.0
    %1677 = vmatprep.subr.mxu0 0.0
    %1678 = vmatpush1.xpose.msra.mxu0 0.0
    %1679 = vmatprep.subr.mxu0 0.0
    %1680 = vmatpush1.xpose.msra.mxu0 0.0
    %1681 = vmatprep.subr.mxu0 0.0
    %1682 = vmatpush1.xpose.msra.mxu0 0.0
    %1683 = vmatprep.subr.mxu0 0.0
    %1684 = vmatpush1.xpose.msra.mxu0 0.0
    %1685 = vmatprep.subr.mxu0 0.0
    %1686 = vmatpush1.xpose.msra.mxu0 0.0
    %1687 = vmatprep.subr.mxu0 0.0
    %1688 = vmatpush1.xpose.msra.mxu0 0.0
    %1689 = vmatprep.subr.mxu0 0.0
    %1690 = vmatpush1.xpose.msra.mxu0 0.0
    %1691 = vmatprep.subr.mxu0 0.0
    %1692 = vmatpush1.xpose.msra.mxu0 0.0
    %1693 = vmatprep.subr.mxu0 0.0
    %1694 = vmatpush1.xpose.msra.mxu0 0.0
    %1695 = vmatprep.mubr.f32.mxu0 %v645
    %1696 = vmatmul.mubr.f32.gmra.mrb[0].mxu0 %v641
    %v1697 = vpop.f32.mrb[0].mxu0
    %v1698 = vadd.f32 %v1623, %v1697
    %v1699 = vpop.f32.mrb[0].mxu0
    %1700 = vmatprep.mubr.f32.mxu0 %v850
    %1701 = vmatmul.mubr.f32.gmra.mrb[0].mxu0 %v848
    %v1702 = vpop.f32.mrb[0].mxu0
    %v1703 = vadd.f32 %v1628, %v1702
    %v1704 = vpop.f32.mrb[0].mxu0
    %1705 = vdwg.mxu0
    %1706 = vmatprep.subr.mxu0 %v1183
    %1707 = vmatpush1.xpose.msra.mxu0 %v1181
    %1708 = vmatprep.subr.mxu0 0.0
    %1709 = vmatpush1.xpose.msra.mxu0 0.0
    %1710 = vmatprep.subr.mxu0 0.0
    %1711 = vmatpush1.xpose.msra.mxu0 0.0
    %1712 = vmatprep.subr.mxu0 0.0
    %1713 = vmatpush1.xpose.msra.mxu0 0.0
    %1714 = vmatprep.subr.mxu0 0.0
    %1715 = vmatpush1.xpose.msra.mxu0 0.0
    %1716 = vmatprep.subr.mxu0 0.0
    %1717 = vmatpush1.xpose.msra.mxu0 0.0
    %1718 = vmatprep.subr.mxu0 0.0
    %1719 = vmatpush1.xpose.msra.mxu0 0.0
    %1720 = vmatprep.subr.mxu0 0.0
    %1721 = vmatpush1.xpose.msra.mxu0 0.0
    %1722 = vmatprep.subr.mxu0 0.0
    %1723 = vmatpush1.xpose.msra.mxu0 0.0
    %1724 = vmatprep.subr.mxu0 0.0
    %1725 = vmatpush1.xpose.msra.mxu0 0.0
    %1726 = vmatprep.subr.mxu0 0.0
    %1727 = vmatpush1.xpose.msra.mxu0 0.0
    %1728 = vmatprep.subr.mxu0 0.0
    %1729 = vmatpush1.xpose.msra.mxu0 0.0
    %1730 = vmatprep.subr.mxu0 0.0
    %1731 = vmatpush1.xpose.msra.mxu0 0.0
    %1732 = vmatprep.subr.mxu0 0.0
    %1733 = vmatpush1.xpose.msra.mxu0 0.0
    %1734 = vmatprep.subr.mxu0 0.0
    %1735 = vmatpush1.xpose.msra.mxu0 0.0
    %1736 = vmatprep.subr.mxu0 0.0
    %1737 = vmatpush1.xpose.msra.mxu0 0.0
    %1738 = vmatprep.subr.mxu0 0.0
    %1739 = vmatpush1.xpose.msra.mxu0 0.0
    %1740 = vmatprep.subr.mxu0 0.0
    %1741 = vmatpush1.xpose.msra.mxu0 0.0
    %1742 = vmatprep.subr.mxu0 0.0
    %1743 = vmatpush1.xpose.msra.mxu0 0.0
    %1744 = vmatprep.subr.mxu0 0.0
    %1745 = vmatpush1.xpose.msra.mxu0 0.0
    %1746 = vmatprep.subr.mxu0 0.0
    %1747 = vmatpush1.xpose.msra.mxu0 0.0
    %1748 = vmatprep.subr.mxu0 0.0
    %1749 = vmatpush1.xpose.msra.mxu0 0.0
    %1750 = vmatprep.subr.mxu0 0.0
    %1751 = vmatpush1.xpose.msra.mxu0 0.0
    %1752 = vmatprep.subr.mxu0 0.0
    %1753 = vmatpush1.xpose.msra.mxu0 0.0
    %1754 = vmatprep.subr.mxu0 0.0
    %1755 = vmatpush1.xpose.msra.mxu0 0.0
    %1756 = vmatprep.subr.mxu0 0.0
    %1757 = vmatpush1.xpose.msra.mxu0 0.0
    %1758 = vmatprep.subr.mxu0 0.0
    %1759 = vmatpush1.xpose.msra.mxu0 0.0
    %1760 = vmatprep.subr.mxu0 0.0
    %1761 = vmatpush1.xpose.msra.mxu0 0.0
    %1762 = vmatprep.subr.mxu0 0.0
    %1763 = vmatpush1.xpose.msra.mxu0 0.0
    %1764 = vmatprep.subr.mxu0 0.0
    %1765 = vmatpush1.xpose.msra.mxu0 0.0
    %1766 = vmatprep.subr.mxu0 0.0
    %1767 = vmatpush1.xpose.msra.mxu0 0.0
    %1768 = vmatprep.subr.mxu0 0.0
    %1769 = vmatpush1.xpose.msra.mxu0 0.0
    %1770 = vmatprep.mubr.f32.mxu0 %v646
    %1771 = vmatmul.mubr.f32.gmra.mrb[0].mxu0 %v642
    %v1772 = vpop.f32.mrb[0].mxu0
    %v1773 = vadd.f32 %v1698, %v1772
    %v1774 = vpop.f32.mrb[0].mxu0
    %1775 = vmatprep.mubr.f32.mxu0 %v847
    %1776 = vmatmul.mubr.f32.gmra.mrb[0].mxu0 %v833
    %v1777 = vpop.f32.mrb[0].mxu0
    %v1778 = vadd.f32 %v1703, %v1777
    %v1779 = vpop.f32.mrb[0].mxu0
    %1780 = vdwg.mxu0
    %1781 = vmatprep.subr.mxu0 %v1254
    %1782 = vmatpush1.xpose.msra.mxu0 %v1252
    %1783 = vmatprep.subr.mxu0 0.0
    %1784 = vmatpush1.xpose.msra.mxu0 0.0
    %1785 = vmatprep.subr.mxu0 0.0
    %1786 = vmatpush1.xpose.msra.mxu0 0.0
    %1787 = vmatprep.subr.mxu0 0.0
    %1788 = vmatpush1.xpose.msra.mxu0 0.0
    %1789 = vmatprep.subr.mxu0 0.0
    %1790 = vmatpush1.xpose.msra.mxu0 0.0
    %1791 = vmatprep.subr.mxu0 0.0
    %1792 = vmatpush1.xpose.msra.mxu0 0.0
    %1793 = vmatprep.subr.mxu0 0.0
    %1794 = vmatpush1.xpose.msra.mxu0 0.0
    %1795 = vmatprep.subr.mxu0 0.0
    %1796 = vmatpush1.xpose.msra.mxu0 0.0
    %1797 = vmatprep.subr.mxu0 0.0
    %1798 = vmatpush1.xpose.msra.mxu0 0.0
    %1799 = vmatprep.subr.mxu0 0.0
    %1800 = vmatpush1.xpose.msra.mxu0 0.0
    %1801 = vmatprep.subr.mxu0 0.0
    %1802 = vmatpush1.xpose.msra.mxu0 0.0
    %1803 = vmatprep.subr.mxu0 0.0
    %1804 = vmatpush1.xpose.msra.mxu0 0.0
    %1805 = vmatprep.subr.mxu0 0.0
    %1806 = vmatpush1.xpose.msra.mxu0 0.0
    %1807 = vmatprep.subr.mxu0 0.0
    %1808 = vmatpush1.xpose.msra.mxu0 0.0
    %1809 = vmatprep.subr.mxu0 0.0
    %1810 = vmatpush1.xpose.msra.mxu0 0.0
    %1811 = vmatprep.subr.mxu0 0.0
    %1812 = vmatpush1.xpose.msra.mxu0 0.0
    %1813 = vmatprep.subr.mxu0 0.0
    %1814 = vmatpush1.xpose.msra.mxu0 0.0
    %1815 = vmatprep.subr.mxu0 0.0
    %1816 = vmatpush1.xpose.msra.mxu0 0.0
    %1817 = vmatprep.subr.mxu0 0.0
    %1818 = vmatpush1.xpose.msra.mxu0 0.0
    %1819 = vmatprep.subr.mxu0 0.0
    %1820 = vmatpush1.xpose.msra.mxu0 0.0
    %1821 = vmatprep.subr.mxu0 0.0
    %1822 = vmatpush1.xpose.msra.mxu0 0.0
    %1823 = vmatprep.subr.mxu0 0.0
    %1824 = vmatpush1.xpose.msra.mxu0 0.0
    %1825 = vmatprep.subr.mxu0 0.0
    %1826 = vmatpush1.xpose.msra.mxu0 0.0
    %1827 = vmatprep.subr.mxu0 0.0
    %1828 = vmatpush1.xpose.msra.mxu0 0.0
    %1829 = vmatprep.subr.mxu0 0.0
    %1830 = vmatpush1.xpose.msra.mxu0 0.0
    %1831 = vmatprep.subr.mxu0 0.0
    %1832 = vmatpush1.xpose.msra.mxu0 0.0
    %1833 = vmatprep.subr.mxu0 0.0
    %1834 = vmatpush1.xpose.msra.mxu0 0.0
    %1835 = vmatprep.subr.mxu0 0.0
    %1836 = vmatpush1.xpose.msra.mxu0 0.0
    %1837 = vmatprep.subr.mxu0 0.0
    %1838 = vmatpush1.xpose.msra.mxu0 0.0
    %1839 = vmatprep.subr.mxu0 0.0
    %1840 = vmatpush1.xpose.msra.mxu0 0.0
    %1841 = vmatprep.subr.mxu0 0.0
    %1842 = vmatpush1.xpose.msra.mxu0 0.0
    %1843 = vmatprep.subr.mxu0 0.0
    %1844 = vmatpush1.xpose.msra.mxu0 0.0
    %1845 = vmatprep.mubr.f32.mxu0 %v647
    %1846 = vmatmul.mubr.f32.gmra.mrb[0].mxu0 %v643
    %v1847 = vpop.f32.mrb[0].mxu0
    %v1848 = vadd.f32 %v1773, %v1847
    %v1849 = vpop.f32.mrb[0].mxu0
    %1850 = vmatprep.mubr.f32.mxu0 %v851
    %1851 = vmatmul.mubr.f32.gmra.mrb[0].mxu0 %v849
    %v1852 = vpop.f32.mrb[0].mxu0
    %v1853 = vadd.f32 %v1778, %v1852
    %v1854 = vpop.f32.mrb[0].mxu0
    %1855 = vdwg.mxu0
    %1856 = vmatprep.subr.mxu0 %v1325
    %1857 = vmatpush1.xpose.msra.mxu0 %v1323
    %1858 = vmatprep.subr.mxu0 0.0
    %1859 = vmatpush1.xpose.msra.mxu0 0.0
    %1860 = vmatprep.subr.mxu0 0.0
    %1861 = vmatpush1.xpose.msra.mxu0 0.0
    %1862 = vmatprep.subr.mxu0 0.0
    %1863 = vmatpush1.xpose.msra.mxu0 0.0
    %1864 = vmatprep.subr.mxu0 0.0
    %1865 = vmatpush1.xpose.msra.mxu0 0.0
    %1866 = vmatprep.subr.mxu0 0.0
    %1867 = vmatpush1.xpose.msra.mxu0 0.0
    %1868 = vmatprep.subr.mxu0 0.0
    %1869 = vmatpush1.xpose.msra.mxu0 0.0
    %1870 = vmatprep.subr.mxu0 0.0
    %1871 = vmatpush1.xpose.msra.mxu0 0.0
    %1872 = vmatprep.subr.mxu0 0.0
    %1873 = vmatpush1.xpose.msra.mxu0 0.0
    %1874 = vmatprep.subr.mxu0 0.0
    %1875 = vmatpush1.xpose.msra.mxu0 0.0
    %1876 = vmatprep.subr.mxu0 0.0
    %1877 = vmatpush1.xpose.msra.mxu0 0.0
    %1878 = vmatprep.subr.mxu0 0.0
    %1879 = vmatpush1.xpose.msra.mxu0 0.0
    %1880 = vmatprep.subr.mxu0 0.0
    %1881 = vmatpush1.xpose.msra.mxu0 0.0
    %1882 = vmatprep.subr.mxu0 0.0
    %1883 = vmatpush1.xpose.msra.mxu0 0.0
    %1884 = vmatprep.subr.mxu0 0.0
    %1885 = vmatpush1.xpose.msra.mxu0 0.0
    %1886 = vmatprep.subr.mxu0 0.0
    %1887 = vmatpush1.xpose.msra.mxu0 0.0
    %1888 = vmatprep.subr.mxu0 0.0
    %1889 = vmatpush1.xpose.msra.mxu0 0.0
    %1890 = vmatprep.subr.mxu0 0.0
    %1891 = vmatpush1.xpose.msra.mxu0 0.0
    %1892 = vmatprep.subr.mxu0 0.0
    %1893 = vmatpush1.xpose.msra.mxu0 0.0
    %1894 = vmatprep.subr.mxu0 0.0
    %1895 = vmatpush1.xpose.msra.mxu0 0.0
    %1896 = vmatprep.subr.mxu0 0.0
    %1897 = vmatpush1.xpose.msra.mxu0 0.0
    %1898 = vmatprep.subr.mxu0 0.0
    %1899 = vmatpush1.xpose.msra.mxu0 0.0
    %1900 = vmatprep.subr.mxu0 0.0
    %1901 = vmatpush1.xpose.msra.mxu0 0.0
    %1902 = vmatprep.subr.mxu0 0.0
    %1903 = vmatpush1.xpose.msra.mxu0 0.0
    %1904 = vmatprep.subr.mxu0 0.0
    %1905 = vmatpush1.xpose.msra.mxu0 0.0
    %1906 = vmatprep.subr.mxu0 0.0
    %1907 = vmatpush1.xpose.msra.mxu0 0.0
    %1908 = vmatprep.subr.mxu0 0.0
    %1909 = vmatpush1.xpose.msra.mxu0 0.0
    %1910 = vmatprep.subr.mxu0 0.0
    %1911 = vmatpush1.xpose.msra.mxu0 0.0
    %1912 = vmatprep.subr.mxu0 0.0
    %1913 = vmatpush1.xpose.msra.mxu0 0.0
    %1914 = vmatprep.subr.mxu0 0.0
    %1915 = vmatpush1.xpose.msra.mxu0 0.0
    %1916 = vmatprep.subr.mxu0 0.0
    %1917 = vmatpush1.xpose.msra.mxu0 0.0
    %1918 = vmatprep.subr.mxu0 0.0
    %1919 = vmatpush1.xpose.msra.mxu0 0.0
    %1920 = vmatprep.mubr.f32.mxu0 %v780
    %1921 = vmatmul.mubr.f32.gmra.mrb[0].mxu0 %v776
    %v1922 = vpop.f32.mrb[0].mxu0
    %v1923 = vadd.f32 %v1848, %v1922
    %v1924 = vpop.f32.mrb[0].mxu0
    %1925 = vmatprep.mubr.f32.mxu0 %v908
    %1926 = vmatmul.mubr.f32.gmra.mrb[0].mxu0 %v894
    %v1927 = vpop.f32.mrb[0].mxu0
    %v1928 = vadd.f32 %v1853, %v1927
    %v1929 = vpop.f32.mrb[0].mxu0
    %1930 = vdwg.mxu0
    %1931 = vmatprep.subr.mxu0 %v1396
    %1932 = vmatpush1.xpose.msra.mxu0 %v1394
    %1933 = vmatprep.subr.mxu0 0.0
    %1934 = vmatpush1.xpose.msra.mxu0 0.0
    %1935 = vmatprep.subr.mxu0 0.0
    %1936 = vmatpush1.xpose.msra.mxu0 0.0
    %1937 = vmatprep.subr.mxu0 0.0
    %1938 = vmatpush1.xpose.msra.mxu0 0.0
    %1939 = vmatprep.subr.mxu0 0.0
    %1940 = vmatpush1.xpose.msra.mxu0 0.0
    %1941 = vmatprep.subr.mxu0 0.0
    %1942 = vmatpush1.xpose.msra.mxu0 0.0
    %1943 = vmatprep.subr.mxu0 0.0
    %1944 = vmatpush1.xpose.msra.mxu0 0.0
    %1945 = vmatprep.subr.mxu0 0.0
    %1946 = vmatpush1.xpose.msra.mxu0 0.0
    %1947 = vmatprep.subr.mxu0 0.0
    %1948 = vmatpush1.xpose.msra.mxu0 0.0
    %1949 = vmatprep.subr.mxu0 0.0
    %1950 = vmatpush1.xpose.msra.mxu0 0.0
    %1951 = vmatprep.subr.mxu0 0.0
    %1952 = vmatpush1.xpose.msra.mxu0 0.0
    %1953 = vmatprep.subr.mxu0 0.0
    %1954 = vmatpush1.xpose.msra.mxu0 0.0
    %1955 = vmatprep.subr.mxu0 0.0
    %1956 = vmatpush1.xpose.msra.mxu0 0.0
    %1957 = vmatprep.subr.mxu0 0.0
    %1958 = vmatpush1.xpose.msra.mxu0 0.0
    %1959 = vmatprep.subr.mxu0 0.0
    %1960 = vmatpush1.xpose.msra.mxu0 0.0
    %1961 = vmatprep.subr.mxu0 0.0
    %1962 = vmatpush1.xpose.msra.mxu0 0.0
    %1963 = vmatprep.subr.mxu0 0.0
    %1964 = vmatpush1.xpose.msra.mxu0 0.0
    %1965 = vmatprep.subr.mxu0 0.0
    %1966 = vmatpush1.xpose.msra.mxu0 0.0
    %1967 = vmatprep.subr.mxu0 0.0
    %1968 = vmatpush1.xpose.msra.mxu0 0.0
    %1969 = vmatprep.subr.mxu0 0.0
    %1970 = vmatpush1.xpose.msra.mxu0 0.0
    %1971 = vmatprep.subr.mxu0 0.0
    %1972 = vmatpush1.xpose.msra.mxu0 0.0
    %1973 = vmatprep.subr.mxu0 0.0
    %1974 = vmatpush1.xpose.msra.mxu0 0.0
    %1975 = vmatprep.subr.mxu0 0.0
    %1976 = vmatpush1.xpose.msra.mxu0 0.0
    %1977 = vmatprep.subr.mxu0 0.0
    %1978 = vmatpush1.xpose.msra.mxu0 0.0
    %1979 = vmatprep.subr.mxu0 0.0
    %1980 = vmatpush1.xpose.msra.mxu0 0.0
    %1981 = vmatprep.subr.mxu0 0.0
    %1982 = vmatpush1.xpose.msra.mxu0 0.0
    %1983 = vmatprep.subr.mxu0 0.0
    %1984 = vmatpush1.xpose.msra.mxu0 0.0
    %1985 = vmatprep.subr.mxu0 0.0
    %1986 = vmatpush1.xpose.msra.mxu0 0.0
    %1987 = vmatprep.subr.mxu0 0.0
    %1988 = vmatpush1.xpose.msra.mxu0 0.0
    %1989 = vmatprep.subr.mxu0 0.0
    %1990 = vmatpush1.xpose.msra.mxu0 0.0
    %1991 = vmatprep.subr.mxu0 0.0
    %1992 = vmatpush1.xpose.msra.mxu0 0.0
    %1993 = vmatprep.subr.mxu0 0.0
    %1994 = vmatpush1.xpose.msra.mxu0 0.0
    %1995 = vmatprep.mubr.f32.mxu0 %v781
    %1996 = vmatmul.mubr.f32.gmra.mrb[0].mxu0 %v777
    %v1997 = vpop.f32.mrb[0].mxu0
    %v1998 = vadd.f32 %v1923, %v1997
    %v1999 = vpop.f32.mrb[0].mxu0
    %2000 = vmatprep.mubr.f32.mxu0 %v918
    %2001 = vmatmul.mubr.f32.gmra.mrb[0].mxu0 %v916
    %v2002 = vpop.f32.mrb[0].mxu0
    %v2003 = vadd.f32 %v1928, %v2002
    %v2004 = vpop.f32.mrb[0].mxu0
    %2005 = vdwg.mxu0
    %2006 = vmatprep.subr.mxu0 %v1467
    %2007 = vmatpush1.xpose.msra.mxu0 %v1465
    %2008 = vmatprep.subr.mxu0 0.0
    %2009 = vmatpush1.xpose.msra.mxu0 0.0
    %2010 = vmatprep.subr.mxu0 0.0
    %2011 = vmatpush1.xpose.msra.mxu0 0.0
    %2012 = vmatprep.subr.mxu0 0.0
    %2013 = vmatpush1.xpose.msra.mxu0 0.0
    %2014 = vmatprep.subr.mxu0 0.0
    %2015 = vmatpush1.xpose.msra.mxu0 0.0
    %2016 = vmatprep.subr.mxu0 0.0
    %2017 = vmatpush1.xpose.msra.mxu0 0.0
    %2018 = vmatprep.subr.mxu0 0.0
    %2019 = vmatpush1.xpose.msra.mxu0 0.0
    %2020 = vmatprep.subr.mxu0 0.0
    %2021 = vmatpush1.xpose.msra.mxu0 0.0
    %2022 = vmatprep.subr.mxu0 0.0
    %2023 = vmatpush1.xpose.msra.mxu0 0.0
    %2024 = vmatprep.subr.mxu0 0.0
    %2025 = vmatpush1.xpose.msra.mxu0 0.0
    %2026 = vmatprep.subr.mxu0 0.0
    %2027 = vmatpush1.xpose.msra.mxu0 0.0
    %2028 = vmatprep.subr.mxu0 0.0
    %2029 = vmatpush1.xpose.msra.mxu0 0.0
    %2030 = vmatprep.subr.mxu0 0.0
    %2031 = vmatpush1.xpose.msra.mxu0 0.0
    %2032 = vmatprep.subr.mxu0 0.0
    %2033 = vmatpush1.xpose.msra.mxu0 0.0
    %2034 = vmatprep.subr.mxu0 0.0
    %2035 = vmatpush1.xpose.msra.mxu0 0.0
    %2036 = vmatprep.subr.mxu0 0.0
    %2037 = vmatpush1.xpose.msra.mxu0 0.0
    %2038 = vmatprep.subr.mxu0 0.0
    %2039 = vmatpush1.xpose.msra.mxu0 0.0
    %2040 = vmatprep.subr.mxu0 0.0
    %2041 = vmatpush1.xpose.msra.mxu0 0.0
    %2042 = vmatprep.subr.mxu0 0.0
    %2043 = vmatpush1.xpose.msra.mxu0 0.0
    %2044 = vmatprep.subr.mxu0 0.0
    %2045 = vmatpush1.xpose.msra.mxu0 0.0
    %2046 = vmatprep.subr.mxu0 0.0
    %2047 = vmatpush1.xpose.msra.mxu0 0.0
    %2048 = vmatprep.subr.mxu0 0.0
    %2049 = vmatpush1.xpose.msra.mxu0 0.0
    %2050 = vmatprep.subr.mxu0 0.0
    %2051 = vmatpush1.xpose.msra.mxu0 0.0
    %2052 = vmatprep.subr.mxu0 0.0
    %2053 = vmatpush1.xpose.msra.mxu0 0.0
    %2054 = vmatprep.subr.mxu0 0.0
    %2055 = vmatpush1.xpose.msra.mxu0 0.0
    %2056 = vmatprep.subr.mxu0 0.0
    %2057 = vmatpush1.xpose.msra.mxu0 0.0
    %2058 = vmatprep.subr.mxu0 0.0
    %2059 = vmatpush1.xpose.msra.mxu0 0.0
    %2060 = vmatprep.subr.mxu0 0.0
    %2061 = vmatpush1.xpose.msra.mxu0 0.0
    %2062 = vmatprep.subr.mxu0 0.0
    %2063 = vmatpush1.xpose.msra.mxu0 0.0
    %2064 = vmatprep.subr.mxu0 0.0
    %2065 = vmatpush1.xpose.msra.mxu0 0.0
    %2066 = vmatprep.subr.mxu0 0.0
    %2067 = vmatpush1.xpose.msra.mxu0 0.0
    %2068 = vmatprep.subr.mxu0 0.0
    %2069 = vmatpush1.xpose.msra.mxu0 0.0
    %2070 = vmatprep.mubr.f32.mxu0 %v782
    %2071 = vmatmul.mubr.f32.gmra.mrb[0].mxu0 %v778
    %v2072 = vpop.f32.mrb[0].mxu0
    %v2073 = vadd.f32 %v1998, %v2072
    %v2074 = vpop.f32.mrb[0].mxu0
    %2075 = vmatprep.mubr.f32.mxu0 %v915
    %2076 = vmatmul.mubr.f32.gmra.mrb[0].mxu0 %v901
    %v2077 = vpop.f32.mrb[0].mxu0
    %v2078 = vadd.f32 %v2003, %v2077
    %v2079 = vpop.f32.mrb[0].mxu0
    %2080 = vdwg.mxu0
    %2081 = vmatprep.subr.mxu0 %v1538
    %2082 = vmatpush1.xpose.msra.mxu0 %v1536
    %2083 = vmatprep.subr.mxu0 0.0
    %2084 = vmatpush1.xpose.msra.mxu0 0.0
    %2085 = vmatprep.subr.mxu0 0.0
    %2086 = vmatpush1.xpose.msra.mxu0 0.0
    %2087 = vmatprep.subr.mxu0 0.0
    %2088 = vmatpush1.xpose.msra.mxu0 0.0
    %2089 = vmatprep.subr.mxu0 0.0
    %2090 = vmatpush1.xpose.msra.mxu0 0.0
    %2091 = vmatprep.subr.mxu0 0.0
    %2092 = vmatpush1.xpose.msra.mxu0 0.0
    %2093 = vmatprep.subr.mxu0 0.0
    %2094 = vmatpush1.xpose.msra.mxu0 0.0
    %2095 = vmatprep.subr.mxu0 0.0
    %2096 = vmatpush1.xpose.msra.mxu0 0.0
    %2097 = vmatprep.subr.mxu0 0.0
    %2098 = vmatpush1.xpose.msra.mxu0 0.0
    %2099 = vmatprep.subr.mxu0 0.0
    %2100 = vmatpush1.xpose.msra.mxu0 0.0
    %2101 = vmatprep.subr.mxu0 0.0
    %2102 = vmatpush1.xpose.msra.mxu0 0.0
    %2103 = vmatprep.subr.mxu0 0.0
    %2104 = vmatpush1.xpose.msra.mxu0 0.0
    %2105 = vmatprep.subr.mxu0 0.0
    %2106 = vmatpush1.xpose.msra.mxu0 0.0
    %2107 = vmatprep.subr.mxu0 0.0
    %2108 = vmatpush1.xpose.msra.mxu0 0.0
    %2109 = vmatprep.subr.mxu0 0.0
    %2110 = vmatpush1.xpose.msra.mxu0 0.0
    %2111 = vmatprep.subr.mxu0 0.0
    %2112 = vmatpush1.xpose.msra.mxu0 0.0
    %2113 = vmatprep.subr.mxu0 0.0
    %2114 = vmatpush1.xpose.msra.mxu0 0.0
    %2115 = vmatprep.subr.mxu0 0.0
    %2116 = vmatpush1.xpose.msra.mxu0 0.0
    %2117 = vmatprep.subr.mxu0 0.0
    %2118 = vmatpush1.xpose.msra.mxu0 0.0
    %2119 = vmatprep.subr.mxu0 0.0
    %2120 = vmatpush1.xpose.msra.mxu0 0.0
    %2121 = vmatprep.subr.mxu0 0.0
    %2122 = vmatpush1.xpose.msra.mxu0 0.0
    %2123 = vmatprep.subr.mxu0 0.0
    %2124 = vmatpush1.xpose.msra.mxu0 0.0
    %2125 = vmatprep.subr.mxu0 0.0
    %2126 = vmatpush1.xpose.msra.mxu0 0.0
    %2127 = vmatprep.subr.mxu0 0.0
    %2128 = vmatpush1.xpose.msra.mxu0 0.0
    %2129 = vmatprep.subr.mxu0 0.0
    %2130 = vmatpush1.xpose.msra.mxu0 0.0
    %2131 = vmatprep.subr.mxu0 0.0
    %2132 = vmatpush1.xpose.msra.mxu0 0.0
    %2133 = vmatprep.subr.mxu0 0.0
    %2134 = vmatpush1.xpose.msra.mxu0 0.0
    %2135 = vmatprep.subr.mxu0 0.0
    %2136 = vmatpush1.xpose.msra.mxu0 0.0
    %2137 = vmatprep.subr.mxu0 0.0
    %2138 = vmatpush1.xpose.msra.mxu0 0.0
    %2139 = vmatprep.subr.mxu0 0.0
    %2140 = vmatpush1.xpose.msra.mxu0 0.0
    %2141 = vmatprep.subr.mxu0 0.0
    %2142 = vmatpush1.xpose.msra.mxu0 0.0
    %2143 = vmatprep.subr.mxu0 0.0
    %2144 = vmatpush1.xpose.msra.mxu0 0.0
    %2145 = vmatprep.mubr.f32.mxu0 %v783
    %2146 = vmatmul.mubr.f32.gmra.mrb[0].mxu0 %v779
    %v2147 = vpop.f32.mrb[0].mxu0
    %v2148 = vadd.f32 %v2073, %v2147
    %v2149 = vpop.f32.mrb[0].mxu0
    %2150 = vmatprep.mubr.f32.mxu0 %v919
    %2151 = vmatmul.mubr.f32.gmra.mrb[0].mxu0 %v917
    %v2152 = vpop.f32.mrb[0].mxu0
    %v2153 = vadd.f32 %v2078, %v2152
    %v2154 = vpop.f32.mrb[0].mxu0
    %2155 = vdwg.mxu0
    %2156 = vmatprep.subr.mxu0 %v1041
    %2157 = vmatpush1.xpose.msra.mxu0 %v1039
    %2158 = vmatprep.subr.mxu0 0.0
    %2159 = vmatpush1.xpose.msra.mxu0 0.0
    %2160 = vmatprep.subr.mxu0 0.0
    %2161 = vmatpush1.xpose.msra.mxu0 0.0
    %2162 = vmatprep.subr.mxu0 0.0
    %2163 = vmatpush1.xpose.msra.mxu0 0.0
    %2164 = vmatprep.subr.mxu0 0.0
    %2165 = vmatpush1.xpose.msra.mxu0 0.0
    %2166 = vmatprep.subr.mxu0 0.0
    %2167 = vmatpush1.xpose.msra.mxu0 0.0
    %2168 = vmatprep.subr.mxu0 0.0
    %2169 = vmatpush1.xpose.msra.mxu0 0.0
    %2170 = vmatprep.subr.mxu0 0.0
    %2171 = vmatpush1.xpose.msra.mxu0 0.0
    %2172 = vmatprep.subr.mxu0 0.0
    %2173 = vmatpush1.xpose.msra.mxu0 0.0
    %2174 = vmatprep.subr.mxu0 0.0
    %2175 = vmatpush1.xpose.msra.mxu0 0.0
    %2176 = vmatprep.subr.mxu0 0.0
    %2177 = vmatpush1.xpose.msra.mxu0 0.0
    %2178 = vmatprep.subr.mxu0 0.0
    %2179 = vmatpush1.xpose.msra.mxu0 0.0
    %2180 = vmatprep.subr.mxu0 0.0
    %2181 = vmatpush1.xpose.msra.mxu0 0.0
    %2182 = vmatprep.subr.mxu0 0.0
    %2183 = vmatpush1.xpose.msra.mxu0 0.0
    %2184 = vmatprep.subr.mxu0 0.0
    %2185 = vmatpush1.xpose.msra.mxu0 0.0
    %2186 = vmatprep.subr.mxu0 0.0
    %2187 = vmatpush1.xpose.msra.mxu0 0.0
    %2188 = vmatprep.subr.mxu0 0.0
    %2189 = vmatpush1.xpose.msra.mxu0 0.0
    %2190 = vmatprep.subr.mxu0 0.0
    %2191 = vmatpush1.xpose.msra.mxu0 0.0
    %2192 = vmatprep.subr.mxu0 0.0
    %2193 = vmatpush1.xpose.msra.mxu0 0.0
    %2194 = vmatprep.subr.mxu0 0.0
    %2195 = vmatpush1.xpose.msra.mxu0 0.0
    %2196 = vmatprep.subr.mxu0 0.0
    %2197 = vmatpush1.xpose.msra.mxu0 0.0
    %2198 = vmatprep.subr.mxu0 0.0
    %2199 = vmatpush1.xpose.msra.mxu0 0.0
    %2200 = vmatprep.subr.mxu0 0.0
    %2201 = vmatpush1.xpose.msra.mxu0 0.0
    %2202 = vmatprep.subr.mxu0 0.0
    %2203 = vmatpush1.xpose.msra.mxu0 0.0
    %2204 = vmatprep.subr.mxu0 0.0
    %2205 = vmatpush1.xpose.msra.mxu0 0.0
    %2206 = vmatprep.subr.mxu0 0.0
    %2207 = vmatpush1.xpose.msra.mxu0 0.0
    %2208 = vmatprep.subr.mxu0 0.0
    %2209 = vmatpush1.xpose.msra.mxu0 0.0
    %2210 = vmatprep.subr.mxu0 0.0
    %2211 = vmatpush1.xpose.msra.mxu0 0.0
    %2212 = vmatprep.subr.mxu0 0.0
    %2213 = vmatpush1.xpose.msra.mxu0 0.0
    %2214 = vmatprep.subr.mxu0 0.0
    %2215 = vmatpush1.xpose.msra.mxu0 0.0
    %2216 = vmatprep.subr.mxu0 0.0
    %2217 = vmatpush1.xpose.msra.mxu0 0.0
    %2218 = vmatprep.subr.mxu0 0.0
    %2219 = vmatpush1.xpose.msra.mxu0 0.0
    %2220 = vmatprep.mubr.f32.mxu0 %v1041
    %2221 = vmatmul.mubr.f32.gmra.mrb[0].mxu0 %v1039
    %v2222 = vpop.f32.mrb[0].mxu0
    %v2223 = vadd.f32 0.0, %v2222
    %v2224 = vpop.f32.mrb[0].mxu0
    %2225 = vdwg.mxu0
    %2226 = vmatprep.subr.mxu0 %v1112
    %2227 = vmatpush1.xpose.msra.mxu0 %v1110
    %2228 = vmatprep.subr.mxu0 0.0
    %2229 = vmatpush1.xpose.msra.mxu0 0.0
    %2230 = vmatprep.subr.mxu0 0.0
    %2231 = vmatpush1.xpose.msra.mxu0 0.0
    %2232 = vmatprep.subr.mxu0 0.0
    %2233 = vmatpush1.xpose.msra.mxu0 0.0
    %2234 = vmatprep.subr.mxu0 0.0
    %2235 = vmatpush1.xpose.msra.mxu0 0.0
    %2236 = vmatprep.subr.mxu0 0.0
    %2237 = vmatpush1.xpose.msra.mxu0 0.0
    %2238 = vmatprep.subr.mxu0 0.0
    %2239 = vmatpush1.xpose.msra.mxu0 0.0
    %2240 = vmatprep.subr.mxu0 0.0
    %2241 = vmatpush1.xpose.msra.mxu0 0.0
    %2242 = vmatprep.subr.mxu0 0.0
    %2243 = vmatpush1.xpose.msra.mxu0 0.0
    %2244 = vmatprep.subr.mxu0 0.0
    %2245 = vmatpush1.xpose.msra.mxu0 0.0
    %2246 = vmatprep.subr.mxu0 0.0
    %2247 = vmatpush1.xpose.msra.mxu0 0.0
    %2248 = vmatprep.subr.mxu0 0.0
    %2249 = vmatpush1.xpose.msra.mxu0 0.0
    %2250 = vmatprep.subr.mxu0 0.0
    %2251 = vmatpush1.xpose.msra.mxu0 0.0
    %2252 = vmatprep.subr.mxu0 0.0
    %2253 = vmatpush1.xpose.msra.mxu0 0.0
    %2254 = vmatprep.subr.mxu0 0.0
    %2255 = vmatpush1.xpose.msra.mxu0 0.0
    %2256 = vmatprep.subr.mxu0 0.0
    %2257 = vmatpush1.xpose.msra.mxu0 0.0
    %2258 = vmatprep.subr.mxu0 0.0
    %2259 = vmatpush1.xpose.msra.mxu0 0.0
    %2260 = vmatprep.subr.mxu0 0.0
    %2261 = vmatpush1.xpose.msra.mxu0 0.0
    %2262 = vmatprep.subr.mxu0 0.0
    %2263 = vmatpush1.xpose.msra.mxu0 0.0
    %2264 = vmatprep.subr.mxu0 0.0
    %2265 = vmatpush1.xpose.msra.mxu0 0.0
    %2266 = vmatprep.subr.mxu0 0.0
    %2267 = vmatpush1.xpose.msra.mxu0 0.0
    %2268 = vmatprep.subr.mxu0 0.0
    %2269 = vmatpush1.xpose.msra.mxu0 0.0
    %2270 = vmatprep.subr.mxu0 0.0
    %2271 = vmatpush1.xpose.msra.mxu0 0.0
    %2272 = vmatprep.subr.mxu0 0.0
    %2273 = vmatpush1.xpose.msra.mxu0 0.0
    %2274 = vmatprep.subr.mxu0 0.0
    %2275 = vmatpush1.xpose.msra.mxu0 0.0
    %2276 = vmatprep.subr.mxu0 0.0
    %2277 = vmatpush1.xpose.msra.mxu0 0.0
    %2278 = vmatprep.subr.mxu0 0.0
    %2279 = vmatpush1.xpose.msra.mxu0 0.0
    %2280 = vmatprep.subr.mxu0 0.0
    %2281 = vmatpush1.xpose.msra.mxu0 0.0
    %2282 = vmatprep.subr.mxu0 0.0
    %2283 = vmatpush1.xpose.msra.mxu0 0.0
    %2284 = vmatprep.subr.mxu0 0.0
    %2285 = vmatpush1.xpose.msra.mxu0 0.0
    %2286 = vmatprep.subr.mxu0 0.0
    %2287 = vmatpush1.xpose.msra.mxu0 0.0
    %2288 = vmatprep.subr.mxu0 0.0
    %2289 = vmatpush1.xpose.msra.mxu0 0.0
    %2290 = vmatprep.mubr.f32.mxu0 %v1112
    %2291 = vmatmul.mubr.f32.gmra.mrb[0].mxu0 %v1110
    %v2292 = vpop.f32.mrb[0].mxu0
    %v2293 = vadd.f32 %v2223, %v2292
    %v2294 = vpop.f32.mrb[0].mxu0
    %2295 = vdwg.mxu0
    %2296 = vmatprep.subr.mxu0 %v1183
    %2297 = vmatpush1.xpose.msra.mxu0 %v1181
    %2298 = vmatprep.subr.mxu0 0.0
    %2299 = vmatpush1.xpose.msra.mxu0 0.0
    %2300 = vmatprep.subr.mxu0 0.0
    %2301 = vmatpush1.xpose.msra.mxu0 0.0
    %2302 = vmatprep.subr.mxu0 0.0
    %2303 = vmatpush1.xpose.msra.mxu0 0.0
    %2304 = vmatprep.subr.mxu0 0.0
    %2305 = vmatpush1.xpose.msra.mxu0 0.0
    %2306 = vmatprep.subr.mxu0 0.0
    %2307 = vmatpush1.xpose.msra.mxu0 0.0
    %2308 = vmatprep.subr.mxu0 0.0
    %2309 = vmatpush1.xpose.msra.mxu0 0.0
    %2310 = vmatprep.subr.mxu0 0.0
    %2311 = vmatpush1.xpose.msra.mxu0 0.0
    %2312 = vmatprep.subr.mxu0 0.0
    %2313 = vmatpush1.xpose.msra.mxu0 0.0
    %2314 = vmatprep.subr.mxu0 0.0
    %2315 = vmatpush1.xpose.msra.mxu0 0.0
    %2316 = vmatprep.subr.mxu0 0.0
    %2317 = vmatpush1.xpose.msra.mxu0 0.0
    %2318 = vmatprep.subr.mxu0 0.0
    %2319 = vmatpush1.xpose.msra.mxu0 0.0
    %2320 = vmatprep.subr.mxu0 0.0
    %2321 = vmatpush1.xpose.msra.mxu0 0.0
    %2322 = vmatprep.subr.mxu0 0.0
    %2323 = vmatpush1.xpose.msra.mxu0 0.0
    %2324 = vmatprep.subr.mxu0 0.0
    %2325 = vmatpush1.xpose.msra.mxu0 0.0
    %2326 = vmatprep.subr.mxu0 0.0
    %2327 = vmatpush1.xpose.msra.mxu0 0.0
    %2328 = vmatprep.subr.mxu0 0.0
    %2329 = vmatpush1.xpose.msra.mxu0 0.0
    %2330 = vmatprep.subr.mxu0 0.0
    %2331 = vmatpush1.xpose.msra.mxu0 0.0
    %2332 = vmatprep.subr.mxu0 0.0
    %2333 = vmatpush1.xpose.msra.mxu0 0.0
    %2334 = vmatprep.subr.mxu0 0.0
    %2335 = vmatpush1.xpose.msra.mxu0 0.0
    %2336 = vmatprep.subr.mxu0 0.0
    %2337 = vmatpush1.xpose.msra.mxu0 0.0
    %2338 = vmatprep.subr.mxu0 0.0
    %2339 = vmatpush1.xpose.msra.mxu0 0.0
    %2340 = vmatprep.subr.mxu0 0.0
    %2341 = vmatpush1.xpose.msra.mxu0 0.0
    %2342 = vmatprep.subr.mxu0 0.0
    %2343 = vmatpush1.xpose.msra.mxu0 0.0
    %2344 = vmatprep.subr.mxu0 0.0
    %2345 = vmatpush1.xpose.msra.mxu0 0.0
    %2346 = vmatprep.subr.mxu0 0.0
    %2347 = vmatpush1.xpose.msra.mxu0 0.0
    %2348 = vmatprep.subr.mxu0 0.0
    %2349 = vmatpush1.xpose.msra.mxu0 0.0
    %2350 = vmatprep.subr.mxu0 0.0
    %2351 = vmatpush1.xpose.msra.mxu0 0.0
    %2352 = vmatprep.subr.mxu0 0.0
    %2353 = vmatpush1.xpose.msra.mxu0 0.0
    %2354 = vmatprep.subr.mxu0 0.0
    %2355 = vmatpush1.xpose.msra.mxu0 0.0
    %2356 = vmatprep.subr.mxu0 0.0
    %2357 = vmatpush1.xpose.msra.mxu0 0.0
    %2358 = vmatprep.subr.mxu0 0.0
    %2359 = vmatpush1.xpose.msra.mxu0 0.0
    %2360 = vmatprep.mubr.f32.mxu0 %v1183
    %2361 = vmatmul.mubr.f32.gmra.mrb[0].mxu0 %v1181
    %v2362 = vpop.f32.mrb[0].mxu0
    %v2363 = vadd.f32 %v2293, %v2362
    %v2364 = vpop.f32.mrb[0].mxu0
    %2365 = vdwg.mxu0
    %2366 = vmatprep.subr.mxu0 %v1254
    %2367 = vmatpush1.xpose.msra.mxu0 %v1252
    %2368 = vmatprep.subr.mxu0 0.0
    %2369 = vmatpush1.xpose.msra.mxu0 0.0
    %2370 = vmatprep.subr.mxu0 0.0
    %2371 = vmatpush1.xpose.msra.mxu0 0.0
    %2372 = vmatprep.subr.mxu0 0.0
    %2373 = vmatpush1.xpose.msra.mxu0 0.0
    %2374 = vmatprep.subr.mxu0 0.0
    %2375 = vmatpush1.xpose.msra.mxu0 0.0
    %2376 = vmatprep.subr.mxu0 0.0
    %2377 = vmatpush1.xpose.msra.mxu0 0.0
    %2378 = vmatprep.subr.mxu0 0.0
    %2379 = vmatpush1.xpose.msra.mxu0 0.0
    %2380 = vmatprep.subr.mxu0 0.0
    %2381 = vmatpush1.xpose.msra.mxu0 0.0
    %2382 = vmatprep.subr.mxu0 0.0
    %2383 = vmatpush1.xpose.msra.mxu0 0.0
    %2384 = vmatprep.subr.mxu0 0.0
    %2385 = vmatpush1.xpose.msra.mxu0 0.0
    %2386 = vmatprep.subr.mxu0 0.0
    %2387 = vmatpush1.xpose.msra.mxu0 0.0
    %2388 = vmatprep.subr.mxu0 0.0
    %2389 = vmatpush1.xpose.msra.mxu0 0.0
    %2390 = vmatprep.subr.mxu0 0.0
    %2391 = vmatpush1.xpose.msra.mxu0 0.0
    %2392 = vmatprep.subr.mxu0 0.0
    %2393 = vmatpush1.xpose.msra.mxu0 0.0
    %2394 = vmatprep.subr.mxu0 0.0
    %2395 = vmatpush1.xpose.msra.mxu0 0.0
    %2396 = vmatprep.subr.mxu0 0.0
    %2397 = vmatpush1.xpose.msra.mxu0 0.0
    %2398 = vmatprep.subr.mxu0 0.0
    %2399 = vmatpush1.xpose.msra.mxu0 0.0
    %2400 = vmatprep.subr.mxu0 0.0
    %2401 = vmatpush1.xpose.msra.mxu0 0.0
    %2402 = vmatprep.subr.mxu0 0.0
    %2403 = vmatpush1.xpose.msra.mxu0 0.0
    %2404 = vmatprep.subr.mxu0 0.0
    %2405 = vmatpush1.xpose.msra.mxu0 0.0
    %2406 = vmatprep.subr.mxu0 0.0
    %2407 = vmatpush1.xpose.msra.mxu0 0.0
    %2408 = vmatprep.subr.mxu0 0.0
    %2409 = vmatpush1.xpose.msra.mxu0 0.0
    %2410 = vmatprep.subr.mxu0 0.0
    %2411 = vmatpush1.xpose.msra.mxu0 0.0
    %2412 = vmatprep.subr.mxu0 0.0
    %2413 = vmatpush1.xpose.msra.mxu0 0.0
    %2414 = vmatprep.subr.mxu0 0.0
    %2415 = vmatpush1.xpose.msra.mxu0 0.0
    %2416 = vmatprep.subr.mxu0 0.0
    %2417 = vmatpush1.xpose.msra.mxu0 0.0
    %2418 = vmatprep.subr.mxu0 0.0
    %2419 = vmatpush1.xpose.msra.mxu0 0.0
    %2420 = vmatprep.subr.mxu0 0.0
    %2421 = vmatpush1.xpose.msra.mxu0 0.0
    %2422 = vmatprep.subr.mxu0 0.0
    %2423 = vmatpush1.xpose.msra.mxu0 0.0
    %2424 = vmatprep.subr.mxu0 0.0
    %2425 = vmatpush1.xpose.msra.mxu0 0.0
    %2426 = vmatprep.subr.mxu0 0.0
    %2427 = vmatpush1.xpose.msra.mxu0 0.0
    %2428 = vmatprep.subr.mxu0 0.0
    %2429 = vmatpush1.xpose.msra.mxu0 0.0
    %2430 = vmatprep.mubr.f32.mxu0 %v1254
    %2431 = vmatmul.mubr.f32.gmra.mrb[0].mxu0 %v1252
    %v2432 = vpop.f32.mrb[0].mxu0
    %v2433 = vadd.f32 %v2363, %v2432
    %v2434 = vpop.f32.mrb[0].mxu0
    %2435 = vdwg.mxu0
    %2436 = vmatprep.subr.mxu0 %v1325
    %2437 = vmatpush1.xpose.msra.mxu0 %v1323
    %2438 = vmatprep.subr.mxu0 0.0
    %2439 = vmatpush1.xpose.msra.mxu0 0.0
    %2440 = vmatprep.subr.mxu0 0.0
    %2441 = vmatpush1.xpose.msra.mxu0 0.0
    %2442 = vmatprep.subr.mxu0 0.0
    %2443 = vmatpush1.xpose.msra.mxu0 0.0
    %2444 = vmatprep.subr.mxu0 0.0
    %2445 = vmatpush1.xpose.msra.mxu0 0.0
    %2446 = vmatprep.subr.mxu0 0.0
    %2447 = vmatpush1.xpose.msra.mxu0 0.0
    %2448 = vmatprep.subr.mxu0 0.0
    %2449 = vmatpush1.xpose.msra.mxu0 0.0
    %2450 = vmatprep.subr.mxu0 0.0
    %2451 = vmatpush1.xpose.msra.mxu0 0.0
    %2452 = vmatprep.subr.mxu0 0.0
    %2453 = vmatpush1.xpose.msra.mxu0 0.0
    %2454 = vmatprep.subr.mxu0 0.0
    %2455 = vmatpush1.xpose.msra.mxu0 0.0
    %2456 = vmatprep.subr.mxu0 0.0
    %2457 = vmatpush1.xpose.msra.mxu0 0.0
    %2458 = vmatprep.subr.mxu0 0.0
    %2459 = vmatpush1.xpose.msra.mxu0 0.0
    %2460 = vmatprep.subr.mxu0 0.0
    %2461 = vmatpush1.xpose.msra.mxu0 0.0
    %2462 = vmatprep.subr.mxu0 0.0
    %2463 = vmatpush1.xpose.msra.mxu0 0.0
    %2464 = vmatprep.subr.mxu0 0.0
    %2465 = vmatpush1.xpose.msra.mxu0 0.0
    %2466 = vmatprep.subr.mxu0 0.0
    %2467 = vmatpush1.xpose.msra.mxu0 0.0
    %2468 = vmatprep.subr.mxu0 0.0
    %2469 = vmatpush1.xpose.msra.mxu0 0.0
    %2470 = vmatprep.subr.mxu0 0.0
    %2471 = vmatpush1.xpose.msra.mxu0 0.0
    %2472 = vmatprep.subr.mxu0 0.0
    %2473 = vmatpush1.xpose.msra.mxu0 0.0
    %2474 = vmatprep.subr.mxu0 0.0
    %2475 = vmatpush1.xpose.msra.mxu0 0.0
    %2476 = vmatprep.subr.mxu0 0.0
    %2477 = vmatpush1.xpose.msra.mxu0 0.0
    %2478 = vmatprep.subr.mxu0 0.0
    %2479 = vmatpush1.xpose.msra.mxu0 0.0
    %2480 = vmatprep.subr.mxu0 0.0
    %2481 = vmatpush1.xpose.msra.mxu0 0.0
    %2482 = vmatprep.subr.mxu0 0.0
    %2483 = vmatpush1.xpose.msra.mxu0 0.0
    %2484 = vmatprep.subr.mxu0 0.0
    %2485 = vmatpush1.xpose.msra.mxu0 0.0
    %2486 = vmatprep.subr.mxu0 0.0
    %2487 = vmatpush1.xpose.msra.mxu0 0.0
    %2488 = vmatprep.subr.mxu0 0.0
    %2489 = vmatpush1.xpose.msra.mxu0 0.0
    %2490 = vmatprep.subr.mxu0 0.0
    %2491 = vmatpush1.xpose.msra.mxu0 0.0
    %2492 = vmatprep.subr.mxu0 0.0
    %2493 = vmatpush1.xpose.msra.mxu0 0.0
    %2494 = vmatprep.subr.mxu0 0.0
    %2495 = vmatpush1.xpose.msra.mxu0 0.0
    %2496 = vmatprep.subr.mxu0 0.0
    %2497 = vmatpush1.xpose.msra.mxu0 0.0
    %2498 = vmatprep.subr.mxu0 0.0
    %2499 = vmatpush1.xpose.msra.mxu0 0.0
    %2500 = vmatprep.mubr.f32.mxu0 %v1325
    %2501 = vmatmul.mubr.f32.gmra.mrb[0].mxu0 %v1323
    %v2502 = vpop.f32.mrb[0].mxu0
    %v2503 = vadd.f32 %v2433, %v2502
    %v2504 = vpop.f32.mrb[0].mxu0
    %2505 = vdwg.mxu0
    %2506 = vmatprep.subr.mxu0 %v1396
    %2507 = vmatpush1.xpose.msra.mxu0 %v1394
    %2508 = vmatprep.subr.mxu0 0.0
    %2509 = vmatpush1.xpose.msra.mxu0 0.0
    %2510 = vmatprep.subr.mxu0 0.0
    %2511 = vmatpush1.xpose.msra.mxu0 0.0
    %2512 = vmatprep.subr.mxu0 0.0
    %2513 = vmatpush1.xpose.msra.mxu0 0.0
    %2514 = vmatprep.subr.mxu0 0.0
    %2515 = vmatpush1.xpose.msra.mxu0 0.0
    %2516 = vmatprep.subr.mxu0 0.0
    %2517 = vmatpush1.xpose.msra.mxu0 0.0
    %2518 = vmatprep.subr.mxu0 0.0
    %2519 = vmatpush1.xpose.msra.mxu0 0.0
    %2520 = vmatprep.subr.mxu0 0.0
    %2521 = vmatpush1.xpose.msra.mxu0 0.0
    %2522 = vmatprep.subr.mxu0 0.0
    %2523 = vmatpush1.xpose.msra.mxu0 0.0
    %2524 = vmatprep.subr.mxu0 0.0
    %2525 = vmatpush1.xpose.msra.mxu0 0.0
    %2526 = vmatprep.subr.mxu0 0.0
    %2527 = vmatpush1.xpose.msra.mxu0 0.0
    %2528 = vmatprep.subr.mxu0 0.0
    %2529 = vmatpush1.xpose.msra.mxu0 0.0
    %2530 = vmatprep.subr.mxu0 0.0
    %2531 = vmatpush1.xpose.msra.mxu0 0.0
    %2532 = vmatprep.subr.mxu0 0.0
    %2533 = vmatpush1.xpose.msra.mxu0 0.0
    %2534 = vmatprep.subr.mxu0 0.0
    %2535 = vmatpush1.xpose.msra.mxu0 0.0
    %2536 = vmatprep.subr.mxu0 0.0
    %2537 = vmatpush1.xpose.msra.mxu0 0.0
    %2538 = vmatprep.subr.mxu0 0.0
    %2539 = vmatpush1.xpose.msra.mxu0 0.0
    %2540 = vmatprep.subr.mxu0 0.0
    %2541 = vmatpush1.xpose.msra.mxu0 0.0
    %2542 = vmatprep.subr.mxu0 0.0
    %2543 = vmatpush1.xpose.msra.mxu0 0.0
    %2544 = vmatprep.subr.mxu0 0.0
    %2545 = vmatpush1.xpose.msra.mxu0 0.0
    %2546 = vmatprep.subr.mxu0 0.0
    %2547 = vmatpush1.xpose.msra.mxu0 0.0
    %2548 = vmatprep.subr.mxu0 0.0
    %2549 = vmatpush1.xpose.msra.mxu0 0.0
    %2550 = vmatprep.subr.mxu0 0.0
    %2551 = vmatpush1.xpose.msra.mxu0 0.0
    %2552 = vmatprep.subr.mxu0 0.0
    %2553 = vmatpush1.xpose.msra.mxu0 0.0
    %2554 = vmatprep.subr.mxu0 0.0
    %2555 = vmatpush1.xpose.msra.mxu0 0.0
    %2556 = vmatprep.subr.mxu0 0.0
    %2557 = vmatpush1.xpose.msra.mxu0 0.0
    %2558 = vmatprep.subr.mxu0 0.0
    %2559 = vmatpush1.xpose.msra.mxu0 0.0
    %2560 = vmatprep.subr.mxu0 0.0
    %2561 = vmatpush1.xpose.msra.mxu0 0.0
    %2562 = vmatprep.subr.mxu0 0.0
    %2563 = vmatpush1.xpose.msra.mxu0 0.0
    %2564 = vmatprep.subr.mxu0 0.0
    %2565 = vmatpush1.xpose.msra.mxu0 0.0
    %2566 = vmatprep.subr.mxu0 0.0
    %2567 = vmatpush1.xpose.msra.mxu0 0.0
    %2568 = vmatprep.subr.mxu0 0.0
    %2569 = vmatpush1.xpose.msra.mxu0 0.0
    %2570 = vmatprep.mubr.f32.mxu0 %v1396
    %2571 = vmatmul.mubr.f32.gmra.mrb[0].mxu0 %v1394
    %v2572 = vpop.f32.mrb[0].mxu0
    %v2573 = vadd.f32 %v2503, %v2572
    %v2574 = vpop.f32.mrb[0].mxu0
    %2575 = vdwg.mxu0
    %2576 = vmatprep.subr.mxu0 %v1467
    %2577 = vmatpush1.xpose.msra.mxu0 %v1465
    %2578 = vmatprep.subr.mxu0 0.0
    %2579 = vmatpush1.xpose.msra.mxu0 0.0
    %2580 = vmatprep.subr.mxu0 0.0
    %2581 = vmatpush1.xpose.msra.mxu0 0.0
    %2582 = vmatprep.subr.mxu0 0.0
    %2583 = vmatpush1.xpose.msra.mxu0 0.0
    %2584 = vmatprep.subr.mxu0 0.0
    %2585 = vmatpush1.xpose.msra.mxu0 0.0
    %2586 = vmatprep.subr.mxu0 0.0
    %2587 = vmatpush1.xpose.msra.mxu0 0.0
    %2588 = vmatprep.subr.mxu0 0.0
    %2589 = vmatpush1.xpose.msra.mxu0 0.0
    %2590 = vmatprep.subr.mxu0 0.0
    %2591 = vmatpush1.xpose.msra.mxu0 0.0
    %2592 = vmatprep.subr.mxu0 0.0
    %2593 = vmatpush1.xpose.msra.mxu0 0.0
    %2594 = vmatprep.subr.mxu0 0.0
    %2595 = vmatpush1.xpose.msra.mxu0 0.0
    %2596 = vmatprep.subr.mxu0 0.0
    %2597 = vmatpush1.xpose.msra.mxu0 0.0
    %2598 = vmatprep.subr.mxu0 0.0
    %2599 = vmatpush1.xpose.msra.mxu0 0.0
    %2600 = vmatprep.subr.mxu0 0.0
    %2601 = vmatpush1.xpose.msra.mxu0 0.0
    %2602 = vmatprep.subr.mxu0 0.0
    %2603 = vmatpush1.xpose.msra.mxu0 0.0
    %2604 = vmatprep.subr.mxu0 0.0
    %2605 = vmatpush1.xpose.msra.mxu0 0.0
    %2606 = vmatprep.subr.mxu0 0.0
    %2607 = vmatpush1.xpose.msra.mxu0 0.0
    %2608 = vmatprep.subr.mxu0 0.0
    %2609 = vmatpush1.xpose.msra.mxu0 0.0
    %2610 = vmatprep.subr.mxu0 0.0
    %2611 = vmatpush1.xpose.msra.mxu0 0.0
    %2612 = vmatprep.subr.mxu0 0.0
    %2613 = vmatpush1.xpose.msra.mxu0 0.0
    %2614 = vmatprep.subr.mxu0 0.0
    %2615 = vmatpush1.xpose.msra.mxu0 0.0
    %2616 = vmatprep.subr.mxu0 0.0
    %2617 = vmatpush1.xpose.msra.mxu0 0.0
    %2618 = vmatprep.subr.mxu0 0.0
    %2619 = vmatpush1.xpose.msra.mxu0 0.0
    %2620 = vmatprep.subr.mxu0 0.0
    %2621 = vmatpush1.xpose.msra.mxu0 0.0
    %2622 = vmatprep.subr.mxu0 0.0
    %2623 = vmatpush1.xpose.msra.mxu0 0.0
    %2624 = vmatprep.subr.mxu0 0.0
    %2625 = vmatpush1.xpose.msra.mxu0 0.0
    %2626 = vmatprep.subr.mxu0 0.0
    %2627 = vmatpush1.xpose.msra.mxu0 0.0
    %2628 = vmatprep.subr.mxu0 0.0
    %2629 = vmatpush1.xpose.msra.mxu0 0.0
    %2630 = vmatprep.subr.mxu0 0.0
    %2631 = vmatpush1.xpose.msra.mxu0 0.0
    %2632 = vmatprep.subr.mxu0 0.0
    %2633 = vmatpush1.xpose.msra.mxu0 0.0
    %2634 = vmatprep.subr.mxu0 0.0
    %2635 = vmatpush1.xpose.msra.mxu0 0.0
    %2636 = vmatprep.subr.mxu0 0.0
    %2637 = vmatpush1.xpose.msra.mxu0 0.0
    %2638 = vmatprep.subr.mxu0 0.0
    %2639 = vmatpush1.xpose.msra.mxu0 0.0
    %2640 = vmatprep.mubr.f32.mxu0 %v1467
    %2641 = vmatmul.mubr.f32.gmra.mrb[0].mxu0 %v1465
    %v2642 = vpop.f32.mrb[0].mxu0
    %v2643 = vadd.f32 %v2573, %v2642
    %v2644 = vpop.f32.mrb[0].mxu0
    %2645 = vdwg.mxu0
    %2646 = vmatprep.subr.mxu0 %v1538
    %2647 = vmatpush1.xpose.msra.mxu0 %v1536
    %2648 = vmatprep.subr.mxu0 0.0
    %2649 = vmatpush1.xpose.msra.mxu0 0.0
    %2650 = vmatprep.subr.mxu0 0.0
    %2651 = vmatpush1.xpose.msra.mxu0 0.0
    %2652 = vmatprep.subr.mxu0 0.0
    %2653 = vmatpush1.xpose.msra.mxu0 0.0
    %2654 = vmatprep.subr.mxu0 0.0
    %2655 = vmatpush1.xpose.msra.mxu0 0.0
    %2656 = vmatprep.subr.mxu0 0.0
    %2657 = vmatpush1.xpose.msra.mxu0 0.0
    %2658 = vmatprep.subr.mxu0 0.0
    %2659 = vmatpush1.xpose.msra.mxu0 0.0
    %2660 = vmatprep.subr.mxu0 0.0
    %2661 = vmatpush1.xpose.msra.mxu0 0.0
    %2662 = vmatprep.subr.mxu0 0.0
    %2663 = vmatpush1.xpose.msra.mxu0 0.0
    %2664 = vmatprep.subr.mxu0 0.0
    %2665 = vmatpush1.xpose.msra.mxu0 0.0
    %2666 = vmatprep.subr.mxu0 0.0
    %2667 = vmatpush1.xpose.msra.mxu0 0.0
    %2668 = vmatprep.subr.mxu0 0.0
    %2669 = vmatpush1.xpose.msra.mxu0 0.0
    %2670 = vmatprep.subr.mxu0 0.0
    %2671 = vmatpush1.xpose.msra.mxu0 0.0
    %2672 = vmatprep.subr.mxu0 0.0
    %2673 = vmatpush1.xpose.msra.mxu0 0.0
    %2674 = vmatprep.subr.mxu0 0.0
    %2675 = vmatpush1.xpose.msra.mxu0 0.0
    %2676 = vmatprep.subr.mxu0 0.0
    %2677 = vmatpush1.xpose.msra.mxu0 0.0
    %2678 = vmatprep.subr.mxu0 0.0
    %2679 = vmatpush1.xpose.msra.mxu0 0.0
    %2680 = vmatprep.subr.mxu0 0.0
    %2681 = vmatpush1.xpose.msra.mxu0 0.0
    %2682 = vmatprep.subr.mxu0 0.0
    %2683 = vmatpush1.xpose.msra.mxu0 0.0
    %2684 = vmatprep.subr.mxu0 0.0
    %2685 = vmatpush1.xpose.msra.mxu0 0.0
    %2686 = vmatprep.subr.mxu0 0.0
    %2687 = vmatpush1.xpose.msra.mxu0 0.0
    %2688 = vmatprep.subr.mxu0 0.0
    %2689 = vmatpush1.xpose.msra.mxu0 0.0
    %2690 = vmatprep.subr.mxu0 0.0
    %2691 = vmatpush1.xpose.msra.mxu0 0.0
    %2692 = vmatprep.subr.mxu0 0.0
    %2693 = vmatpush1.xpose.msra.mxu0 0.0
    %2694 = vmatprep.subr.mxu0 0.0
    %2695 = vmatpush1.xpose.msra.mxu0 0.0
    %2696 = vmatprep.subr.mxu0 0.0
    %2697 = vmatpush1.xpose.msra.mxu0 0.0
    %2698 = vmatprep.subr.mxu0 0.0
    %2699 = vmatpush1.xpose.msra.mxu0 0.0
    %2700 = vmatprep.subr.mxu0 0.0
    %2701 = vmatpush1.xpose.msra.mxu0 0.0
    %2702 = vmatprep.subr.mxu0 0.0
    %2703 = vmatpush1.xpose.msra.mxu0 0.0
    %2704 = vmatprep.subr.mxu0 0.0
    %2705 = vmatpush1.xpose.msra.mxu0 0.0
    %2706 = vmatprep.subr.mxu0 0.0
    %2707 = vmatpush1.xpose.msra.mxu0 0.0
    %2708 = vmatprep.subr.mxu0 0.0
    %2709 = vmatpush1.xpose.msra.mxu0 0.0
    %2710 = vmatprep.mubr.f32.mxu0 %v1538
    %2711 = vmatmul.mubr.f32.gmra.mrb[0].mxu0 %v1536
    %v2712 = vpop.f32.mrb[0].mxu0
    %v2713 = vadd.f32 %v2643, %v2712
    %v2714 = vpop.f32.mrb[0].mxu0
    %2715 = vdwg.mxu0
    %v2716 = vlaneseq
    %v2717 = vshrl.u32 %v2716, 7
    %v2718 = vlaneseq
    %v2719 = vand.u32 %v2718, 127
    %vm2720 = vcmp.eq.s32.totalorder %v2717, %v2719
    %v2721 = vsel %vm2720, 1, 0
    %v2722 = vcvt.s32.f32 %v2721
    %v2723 = vmul.f32 %v2713, %v2722
    %vm2724 = vcmask 18432
    %v2725 = vsel %vm2724, %v2723, 0.0
    %v2726 = vrot.slane %v2725, 4
    %v2727 = vadd.f32 %v2725, %v2726
    %v2728 = vrot.slane %v2727, 2
    %v2729 = vadd.f32 %v2727, %v2728
    %v2730 = vrot.slane %v2729, 1
    %v2731 = vadd.f32 %v2729, %v2730
    %v2732 = vmul.f32 %v2148, 2.0
    %v2733 = vmul.f32 %v2153, 2.0
    %v2734 = vsub.f32 %v2732, %v2731
    %v2735 = vsub.f32 %v2733, %v2731
    %vm2736 = vcmask 23558
    %v2737 = vsel %vm2736, %v2734, -inf
    %2738 = vmax.xlane.f32.xlu0 %v2737
    %v2739 = vpop.xlane.xlu0 %2738
    %vm2740 = vcmask 19456
    %v2741 = vsel %vm2740, %v2735, -inf
    %2742 = vmax.xlane.f32.xlu0 %v2741
    %v2743 = vpop.xlane.xlu0 %2742
    %v2744 = vsub.f32 %v2734, %v2739
    %v2745 = vsub.f32 %v2735, %v2743
    %v2746 = vmul.f32 %v2744, 1.442695
    %v2747 = vpow.pop %v2746
    %v2748 = vmul.f32 %v2745, 1.442695
    %v2749 = vpow.pop %v2748
    %v2750 = vsel %vm2736, %v2747, 0.0
    %2751 = vadd.xlane.f32.xlu0 %v2750
    %v2752 = vpop.xlane.xlu0 %2751
    %v2753 = vsel %vm2740, %v2749, 0.0
    %2754 = vadd.xlane.f32.xlu0 %v2753
    %v2755 = vpop.xlane.xlu0 %2754
    %v2756 = vlog2.pop %v2752
    %v2757 = vmul.f32 %v2756, 0.6931472
    %v2758 = vlog2.pop %v2755
    %v2759 = vmul.f32 %v2758, 0.6931472
    %v2760 = vadd.f32 %v2739, %v2757
    %v2761 = vadd.f32 %v2743, %v2759
    %v2762 = vsub.f32 %v2734, %v2760
    %v2763 = vsub.f32 %v2735, %v2761
    %2764 = vst.msk [vmem:[%s4 - $0x6] sm:$0xc0] %vm2736, %v2762
    %2765 = vst.msk [vmem:[%s4 + $0x2] sm:$0xf] %vm2740, %v2763
    // Predicated region
    $region26: #{tpu_custom_call.1} parent=1 // pred_check
      _
    $region27: #{tpu_custom_call.1} parent=1 // pred_check_branch
      %2767 = sbr.rel (0) target = $region29
    $region28: #{tpu_custom_call.1} parent=1 // pred_region
      _
    $region29: #{tpu_custom_call.1} parent=1 // pred_fallthru
      _
    // Predicated region
    $region30: #{tpu_custom_call.1} parent=1 // pred_check
      _
    $region31: #{tpu_custom_call.1} parent=1 // pred_check_branch
      %2769 = sbr.rel (0) target = $region33
    $region32: #{tpu_custom_call.1} parent=1 // pred_region
      _
    $region33: #{tpu_custom_call.1} parent=1 // pred_fallthru
      _
    %2770 = vsyncpa [#allocation3], 1
    %2771 = vsyncpa [#allocation5], 1

</llo_original>
